<compile_context>
chip_gen: v5e
topology: v5e:2x2
jax: 0.10.0
libtpu: 0.0.40
codegen_flags: <defaults>
</compile_context>

<pallas_src>
import functools

import jax
import jax.numpy as jnp
from jax import lax
from jax.experimental import pallas as pl
from jax.experimental.pallas import tpu as pltpu


def _round_up(x, m):
    return ((x + m - 1) // m) * m


@functools.lru_cache(maxsize=1)
def _tpu_kind():
    try:
        d = jax.devices()[0]
        if d.platform != "tpu":
            return ""
        return d.device_kind.lower()
    except Exception:  # pragma: no cover - defensive
        return ""


def _lstm_fc_kernel(num_layers, hidden, seq_len, act_dtype,
                    x_ref, wih0_ref, wihr_ref, whh_ref, bias_ref,
                    wfc_ref, bfc_ref, out_ref, xproj_ref, hseq_ref):
    """Stacked LSTM over the full sequence, then Linear on h_T.

    Ref shapes (per batch tile TB, H = hidden, Wg = round_up(4H,128),
    Dp = padded input features, Kp = padded fc output):
      x_ref    : (T, TB, Dp)            bf16 time-major input tile
      wih0_ref : (Dp, Wg)               bf16 layer-0 input->gate weights
      wihr_ref : (max(L-1,1), H, Wg)    bf16 layer>=1 input->gate weights
      whh_ref  : (L, H, Wg)             bf16 hidden->gate weights
      bias_ref : (L, 1, Wg)             f32  (b_ih + b_hh)
      wfc_ref  : (H, Kp)                bf16 fc weight
      bfc_ref  : (1, Kp)                f32
      out_ref  : (TB, Kp)               f32
      xproj_ref: (T, TB, Wg)            bf16 scratch: hoisted input projection
      hseq_ref : (T, TB, H)             bf16 scratch: layer's output sequence
    Gate column order inside Wg is (i, f, o, g), each of width H.
    """
    T = seq_len
    H = hidden
    TB = x_ref.shape[1]
    Wg = xproj_ref.shape[2]

    h_last = jnp.zeros((TB, H), jnp.bfloat16)
    for layer in range(num_layers):                       # static unroll
        # ---- hoisted input->gate projection: one MXU matmul per layer.
        if layer == 0:
            inp2d = x_ref[...].reshape(T * TB, x_ref.shape[2])
            w_in = wih0_ref[...]
        else:
            inp2d = hseq_ref[...].reshape(T * TB, H)
            w_in = wihr_ref[layer - 1]
        proj = jnp.dot(inp2d, w_in, preferred_element_type=jnp.float32)
        proj = proj + bias_ref[layer]                     # fused b_ih + b_hh
        xproj_ref[...] = proj.reshape(T, TB, Wg).astype(xproj_ref.dtype)

        whh_l = whh_ref[layer]                            # (H, Wg) bf16
        write_seq = layer < num_layers - 1                # skip store on top

        def step(t, carry, whh_l=whh_l, write_seq=write_seq):
            h, c = carry                                  # h: bf16, c: f32
            gates = xproj_ref[t] + jnp.dot(
                h, whh_l, preferred_element_type=jnp.float32)   # (TB, Wg) f32
            gact = gates.astype(act_dtype)
            # Packed gate order (i, f, o, g): one sigmoid over 3H, one tanh
            # over H.  Lane extraction of the H-wide pieces rides the XLU.
            sig = jax.nn.sigmoid(gact[:, 0:3 * H])
            i_g = sig[:, 0 * H:1 * H]
            f_g = sig[:, 1 * H:2 * H]
            o_g = sig[:, 2 * H:3 * H]
            g_g = jnp.tanh(gact[:, 3 * H:4 * H])
            c_new = (f_g.astype(jnp.float32) * c
                     + i_g.astype(jnp.float32) * g_g.astype(jnp.float32))
            h_new = (o_g.astype(jnp.float32)
                     * jnp.tanh(c_new)).astype(jnp.bfloat16)
            if write_seq:
                hseq_ref[t] = h_new                       # next layer's input
            return h_new, c_new

        h0 = jnp.zeros((TB, H), jnp.bfloat16)
        c0 = jnp.zeros((TB, H), jnp.float32)
        h_last, _ = lax.fori_loop(0, T, step, (h0, c0),
                                  unroll=True if T <= 16 else 4)

    # fc(out[:, -1, :]) == Linear on the top layer's h_T; lane-dense store.
    out_ref[...] = (jnp.dot(h_last, wfc_ref[...],
                            preferred_element_type=jnp.float32)
                    + bfc_ref[...])


@functools.partial(jax.jit, static_argnames=("hidden_size", "num_layers"))
def lstm_fc_forward(x, packed_params, *, hidden_size, num_layers):
    """x: (B, T, input_size) float32 — batch-first, like the PyTorch module."""
    wih0_p, wihr_p, whh_p, bias_p, wfc_p, bfc_p = packed_params
    B, T, d_in = x.shape
    H = hidden_size
    Wg = whh_p.shape[2]
    Din_p = wih0_p.shape[0]
    Kp = wfc_p.shape[1]
    K_out = Kp  # kernel writes the padded width; sliced by caller helper

    kind = _tpu_kind()
    is_v5 = "v5" in kind
    act_dtype = jnp.float32 if is_v5 else jnp.bfloat16   # bf16 EUP on v6e/v7x

    # Batch tile: multiple of 16 (bf16 sublane tile), capped at 128 (one MXU
    # pass).  On v7x prefer >= 2 tiles so the parallel axis uses both TCs.
    TB = min(128, _round_up(B, 16))
    if ("v7" in kind) and B > 16 and (_round_up(B, TB) // TB) < 2:
        TB = _round_up((B + 1) // 2, 16)
    Bp = _round_up(B, TB)

    # batch-first -> time-major, zero-pad batch & feature dims, cast to bf16.
    # (This whole block is inside jit, so it fuses into a single XLA pass.)
    x_tm = jnp.transpose(x, (1, 0, 2)).astype(jnp.bfloat16)
    x_pad = jnp.pad(x_tm, ((0, 0), (0, Bp - B), (0, Din_p - d_in)))

    kernel = functools.partial(_lstm_fc_kernel, num_layers, H, T, act_dtype)

    def full_spec(shape):
        return pl.BlockSpec(shape, lambda b, _n=len(shape): (0,) * _n)

    # VMEM budget derived from actual block / scratch sizes.
    def _nbytes(a):
        return int(a.size) * a.dtype.itemsize
    weight_bytes = sum(_nbytes(w) for w in
                       (wih0_p, wihr_p, whh_p, bias_p, wfc_p, bfc_p))
    block_bytes = T * TB * Din_p * 2 + TB * Kp * 4
    scratch_bytes = T * TB * Wg * 2 + T * TB * H * 2
    needed = 2 * (weight_bytes + block_bytes) + scratch_bytes
    cap = (48 << 20) if ("v7" in kind) else (100 << 20)
    vmem_limit = int(min(cap, max(32 << 20, 2 * needed)))

    out_p = pl.pallas_call(
        kernel,
        out_shape=jax.ShapeDtypeStruct((Bp, K_out), jnp.float32),
        grid_spec=pltpu.PrefetchScalarGridSpec(
            num_scalar_prefetch=0,
            grid=(Bp // TB,),
            in_specs=[
                pl.BlockSpec((T, TB, Din_p), lambda b: (0, b, 0)),  # x
                full_spec(wih0_p.shape),
                full_spec(wihr_p.shape),
                full_spec(whh_p.shape),
                full_spec(bias_p.shape),
                full_spec(wfc_p.shape),
                full_spec(bfc_p.shape),
            ],
            out_specs=pl.BlockSpec((TB, K_out), lambda b: (b, 0)),
            scratch_shapes=[
                pltpu.VMEM((T, TB, Wg), jnp.bfloat16),   # hoisted x-proj
                pltpu.VMEM((T, TB, H), jnp.bfloat16),    # layer output seq
            ],
        ),
        compiler_params=pltpu.CompilerParams(
            dimension_semantics=("parallel",),
            vmem_limit_bytes=vmem_limit,
        ),
    )(x_pad, wih0_p, wihr_p, whh_p, bias_p, wfc_p, bfc_p)
    return out_p[:B]


def make_params(key, input_size, hidden_size, num_layers, num_keys):
    """Deterministic init mimicking nn.LSTM / nn.Linear; returns packed + raw."""
    H = hidden_size
    Wg = _round_up(4 * H, 128)            # packed gate slab (i, f, o, g)
    Din_p = _round_up(input_size, 128)
    Kp = _round_up(num_keys, 128)
    k_lstm = 1.0 / jnp.sqrt(jnp.float32(H))
    k_fc = 1.0 / jnp.sqrt(jnp.float32(H))

    raw_lstm = []
    wih0_p = jnp.zeros((Din_p, Wg), jnp.float32)
    wihr_p = jnp.zeros((max(num_layers - 1, 1), H, Wg), jnp.float32)
    whh_p = jnp.zeros((num_layers, H, Wg), jnp.float32)
    bias_p = jnp.zeros((num_layers, 1, Wg), jnp.float32)

    # Packed slot order (i, f, o, g) <- PyTorch row-block order (i, f, g, o).
    gate_src = (0, 1, 3, 2)

    for layer in range(num_layers):
        in_dim = input_size if layer == 0 else H
        key, k1, k2, k3, k4 = jax.random.split(key, 5)
        w_ih = jax.random.uniform(k1, (4 * H, in_dim), jnp.float32,
                                  -k_lstm, k_lstm)
        w_hh = jax.random.uniform(k2, (4 * H, H), jnp.float32, -k_lstm, k_lstm)
        b_ih = jax.random.uniform(k3, (4 * H,), jnp.float32, -k_lstm, k_lstm)
        b_hh = jax.random.uniform(k4, (4 * H,), jnp.float32, -k_lstm, k_lstm)
        raw_lstm.append((w_ih, w_hh, b_ih, b_hh))

        b_sum = b_ih + b_hh
        for s, g in enumerate(gate_src):
            col = s * H
            w_ih_g = w_ih[g * H:(g + 1) * H, :].T            # (in_dim, H)
            w_hh_g = w_hh[g * H:(g + 1) * H, :].T            # (H, H)
            if layer == 0:
                wih0_p = wih0_p.at[:in_dim, col:col + H].set(w_ih_g)
            else:
                wihr_p = wihr_p.at[layer - 1, :, col:col + H].set(w_ih_g)
            whh_p = whh_p.at[layer, :, col:col + H].set(w_hh_g)
            bias_p = bias_p.at[layer, 0,
                               col:col + H].set(b_sum[g * H:(g + 1) * H])

    key, k5, k6 = jax.random.split(key, 3)
    w_fc = jax.random.uniform(k5, (num_keys, H), jnp.float32, -k_fc, k_fc)
    b_fc = jax.random.uniform(k6, (num_keys,), jnp.float32, -k_fc, k_fc)
    wfc_p = jnp.zeros((H, Kp), jnp.float32).at[:, :num_keys].set(w_fc.T)
    bfc_p = jnp.zeros((1, Kp), jnp.float32).at[0, :num_keys].set(b_fc)

    packed = (wih0_p.astype(jnp.bfloat16),
              wihr_p.astype(jnp.bfloat16),
              whh_p.astype(jnp.bfloat16),
              bias_p,                               # biases stay f32
              wfc_p.astype(jnp.bfloat16),
              bfc_p)
    raw = {"lstm": raw_lstm, "fc": (w_fc, b_fc)}
    return packed, raw


def reference_forward(x, raw, hidden_size, num_layers):
    """Pure-JAX f32 mirror of the PyTorch module (correctness check)."""
    B, T, _ = x.shape
    H = hidden_size
    layer_in = x
    for layer in range(num_layers):
        w_ih, w_hh, b_ih, b_hh = raw["lstm"][layer]
        h = jnp.zeros((B, H), jnp.float32)
        c = jnp.zeros((B, H), jnp.float32)
        outs = []
        for t in range(T):
            gates = layer_in[:, t, :] @ w_ih.T + h @ w_hh.T + b_ih + b_hh
            i, f, g, o = jnp.split(gates, 4, axis=1)
            i = jax.nn.sigmoid(i)
            f = jax.nn.sigmoid(f)
            g = jnp.tanh(g)
            o = jax.nn.sigmoid(o)
            c = f * c + i * g
            h = o * jnp.tanh(c)
            outs.append(h)
        layer_in = jnp.stack(outs, axis=1)
    w_fc, b_fc = raw["fc"]
    return layer_in[:, -1, :] @ w_fc.T + b_fc


if __name__ == "__main__":
    # Small shapes consistent with the module's forward.
    batch, seq_len = 2, 8
    input_size, hidden_size, num_layers, num_keys = 8, 32, 2, 16

    key = jax.random.PRNGKey(0)
    key, kx = jax.random.split(key)
    x = jax.random.normal(kx, (batch, seq_len, input_size), jnp.float32)

    packed, raw = make_params(key, input_size, hidden_size, num_layers,
                              num_keys)

    out_full = lstm_fc_forward(x, packed,
                               hidden_size=hidden_size, num_layers=num_layers)
    out_full = jax.block_until_ready(out_full)
    out = out_full[:, :num_keys]          # drop lane padding of the fc output

    ref = reference_forward(x, raw, hidden_size, num_layers)
    assert out.shape == (batch, num_keys)
    max_err = jnp.max(jnp.abs(out - ref))
    # bf16 weights / activations / pre-activation gates with f32 accumulation
    # -> loosened tolerance.
    assert jnp.allclose(out, ref, rtol=5e-2, atol=5e-2), (
        f"max abs err {max_err}")

    print("KERNEL_OK")
</pallas_src>

<mosaic_0001>
module attributes {stable_mosaic.version = 11 : i64} {
  func.func @_lstm_fc_kernel(%arg0: i32, %arg1: memref<8x16x128xbf16, #tpu.memory_space<vmem>>, %arg2: memref<128x128xbf16, #tpu.memory_space<vmem>>, %arg3: memref<1x32x128xbf16, #tpu.memory_space<vmem>>, %arg4: memref<2x32x128xbf16, #tpu.memory_space<vmem>>, %arg5: memref<2x1x128xf32, #tpu.memory_space<vmem>>, %arg6: memref<32x128xbf16, #tpu.memory_space<vmem>>, %arg7: memref<1x128xf32, #tpu.memory_space<vmem>>, %arg8: memref<16x128xf32, #tpu.memory_space<vmem>>, %arg9: memref<8x16x128xbf16, #tpu.memory_space<vmem>>, %arg10: memref<8x16x32xbf16, #tpu.memory_space<vmem>>) attributes {dimension_semantics = [#tpu.dimension_semantics<parallel>], iteration_bounds = array<i64: 1>, scalar_prefetch = 0 : i64, scratch_operands = 2 : i64, tpu.core_type = #tpu.core_type<tc>, window_params = [{transform_indices = @transform_0, window_bounds = array<i64: 8, 16, 128>}, {pipeline_mode = #tpu.pipeline_mode<synchronous>, transform_indices = @transform_1, window_bounds = array<i64: 128, 128>}, {pipeline_mode = #tpu.pipeline_mode<synchronous>, transform_indices = @transform_2, window_bounds = array<i64: 1, 32, 128>}, {pipeline_mode = #tpu.pipeline_mode<synchronous>, transform_indices = @transform_3, window_bounds = array<i64: 2, 32, 128>}, {pipeline_mode = #tpu.pipeline_mode<synchronous>, transform_indices = @transform_4, window_bounds = array<i64: 2, 1, 128>}, {pipeline_mode = #tpu.pipeline_mode<synchronous>, transform_indices = @transform_5, window_bounds = array<i64: 32, 128>}, {pipeline_mode = #tpu.pipeline_mode<synchronous>, transform_indices = @transform_6, window_bounds = array<i64: 1, 128>}, {transform_indices = @transform_7, window_bounds = array<i64: 16, 128>}]} {
    %c0 = arith.constant 0 : index
    %c0_0 = arith.constant 0 : index
    %c0_1 = arith.constant 0 : index
    %0 = vector.load %arg1[%c0, %c0_0, %c0_1] : memref<8x16x128xbf16, #tpu.memory_space<vmem>>, vector<8x16x128xbf16>
    %1 = vector.shape_cast %0 : vector<8x16x128xbf16> to vector<128x128xbf16>
    %c0_2 = arith.constant 0 : index
    %c0_3 = arith.constant 0 : index
    %2 = vector.load %arg2[%c0_2, %c0_3] : memref<128x128xbf16, #tpu.memory_space<vmem>>, vector<128x128xbf16>
    %cst = arith.constant dense<0.000000e+00> : vector<128x128xf32>
    %3 = tpu.matmul %1, %2, %cst {dimension_numbers = #tpu.dot_dimension_numbers<[1], [0], [0], [1], [0, 0, 1, 1], [], []>} : vector<128x128xbf16>, vector<128x128xbf16>, vector<128x128xf32> -> vector<128x128xf32>
    %c0_4 = arith.constant 0 : index
    %c0_5 = arith.constant 0 : index
    %c0_6 = arith.constant 0 : index
    %4 = vector.load %arg5[%c0_4, %c0_5, %c0_6] : memref<2x1x128xf32, #tpu.memory_space<vmem>>, vector<1x1x128xf32>
    %5 = vector.shape_cast %4 : vector<1x1x128xf32> to vector<1x128xf32>
    %6 = vector.broadcast %5 : vector<1x128xf32> to vector<128x128xf32>
    %7 = arith.addf %3, %6 : vector<128x128xf32>
    %8 = vector.shape_cast %7 : vector<128x128xf32> to vector<8x16x128xf32>
    %9 = arith.truncf %8 : vector<8x16x128xf32> to vector<8x16x128xbf16>
    %c0_7 = arith.constant 0 : index
    %c0_8 = arith.constant 0 : index
    %c0_9 = arith.constant 0 : index
    %10 = vector.load %arg9[%c0_7, %c0_8, %c0_9] : memref<8x16x128xbf16, #tpu.memory_space<vmem>>, vector<8x16x128xbf16>
    tpu.vector_store %arg9[%c0_7, %c0_8, %c0_9], %9 {strides = array<i32>} : memref<8x16x128xbf16, #tpu.memory_space<vmem>>, vector<8x16x128xbf16>,
    %c0_10 = arith.constant 0 : index
    %c0_11 = arith.constant 0 : index
    %c0_12 = arith.constant 0 : index
    %11 = vector.load %arg4[%c0_10, %c0_11, %c0_12] : memref<2x32x128xbf16, #tpu.memory_space<vmem>>, vector<1x32x128xbf16>
    %12 = vector.shape_cast %11 : vector<1x32x128xbf16> to vector<32x128xbf16>
    %cst_13 = arith.constant 0.000000e+00 : bf16
    %13 = vector.broadcast %cst_13 : bf16 to vector<16x32xbf16>
    %cst_14 = arith.constant 0.000000e+00 : f32
    %14 = vector.broadcast %cst_14 : f32 to vector<16x32xf32>
    %c0_i32 = arith.constant 0 : i32
    %15 = arith.index_cast %c0_i32 : i32 to index
    %c0_15 = arith.constant 0 : index
    %c0_16 = arith.constant 0 : index
    %16 = vector.load %arg9[%15, %c0_15, %c0_16] : memref<8x16x128xbf16, #tpu.memory_space<vmem>>, vector<1x16x128xbf16>
    %17 = vector.shape_cast %16 : vector<1x16x128xbf16> to vector<16x128xbf16>
    %cst_17 = arith.constant dense<0.000000e+00> : vector<16x128xf32>
    %18 = tpu.matmul %13, %12, %cst_17 {dimension_numbers = #tpu.dot_dimension_numbers<[1], [0], [0], [1], [0, 0, 1, 1], [], []>} : vector<16x32xbf16>, vector<32x128xbf16>, vector<16x128xf32> -> vector<16x128xf32>
    %19 = arith.extf %17 : vector<16x128xbf16> to vector<16x128xf32>
    %20 = arith.addf %19, %18 : vector<16x128xf32>
    %21 = arith.truncf %20 : vector<16x128xf32> to vector<16x128xbf16>
    %22 = vector.extract_strided_slice %21 {offsets = [0, 0], sizes = [16, 96], strides = [1, 1]} : vector<16x128xbf16> to vector<16x96xbf16>
    %23 = arith.negf %22 : vector<16x96xbf16>
    %24 = math.exp %23 : vector<16x96xbf16>
    %cst_18 = arith.constant 1.000000e+00 : bf16
    %25 = vector.broadcast %cst_18 : bf16 to vector<16x96xbf16>
    %26 = arith.addf %25, %24 : vector<16x96xbf16>
    %27 = arith.divf %25, %26 : vector<16x96xbf16>
    %28 = vector.extract_strided_slice %27 {offsets = [0, 0], sizes = [16, 32], strides = [1, 1]} : vector<16x96xbf16> to vector<16x32xbf16>
    %29 = vector.extract_strided_slice %27 {offsets = [0, 32], sizes = [16, 32], strides = [1, 1]} : vector<16x96xbf16> to vector<16x32xbf16>
    %30 = vector.extract_strided_slice %27 {offsets = [0, 64], sizes = [16, 32], strides = [1, 1]} : vector<16x96xbf16> to vector<16x32xbf16>
    %31 = vector.extract_strided_slice %21 {offsets = [0, 96], sizes = [16, 32], strides = [1, 1]} : vector<16x128xbf16> to vector<16x32xbf16>
    %32 = math.tanh %31 : vector<16x32xbf16>
    %33 = arith.extf %29 : vector<16x32xbf16> to vector<16x32xf32>
    %34 = arith.mulf %33, %14 : vector<16x32xf32>
    %35 = arith.extf %28 : vector<16x32xbf16> to vector<16x32xf32>
    %36 = arith.extf %32 : vector<16x32xbf16> to vector<16x32xf32>
    %37 = arith.mulf %35, %36 : vector<16x32xf32>
    %38 = arith.addf %34, %37 : vector<16x32xf32>
    %39 = arith.extf %30 : vector<16x32xbf16> to vector<16x32xf32>
    %40 = math.tanh %38 : vector<16x32xf32>
    %41 = arith.mulf %39, %40 : vector<16x32xf32>
    %42 = arith.truncf %41 : vector<16x32xf32> to vector<16x32xbf16>
    %43 = arith.index_cast %c0_i32 : i32 to index
    %c0_19 = arith.constant 0 : index
    %c0_20 = arith.constant 0 : index
    %44 = vector.load %arg10[%43, %c0_19, %c0_20] : memref<8x16x32xbf16, #tpu.memory_space<vmem>>, vector<1x16x32xbf16>
    %45 = vector.shape_cast %44 : vector<1x16x32xbf16> to vector<16x32xbf16>
    %46 = vector.shape_cast %42 : vector<16x32xbf16> to vector<1x16x32xbf16>
    tpu.vector_store %arg10[%43, %c0_19, %c0_20], %46 {strides = array<i32>} : memref<8x16x32xbf16, #tpu.memory_space<vmem>>, vector<1x16x32xbf16>,
    %c1_i32 = arith.constant 1 : i32
    %47 = arith.index_cast %c1_i32 : i32 to index
    %c0_21 = arith.constant 0 : index
    %c0_22 = arith.constant 0 : index
    %48 = vector.load %arg9[%47, %c0_21, %c0_22] : memref<8x16x128xbf16, #tpu.memory_space<vmem>>, vector<1x16x128xbf16>
    %49 = vector.shape_cast %48 : vector<1x16x128xbf16> to vector<16x128xbf16>
    %cst_23 = arith.constant dense<0.000000e+00> : vector<16x128xf32>
    %50 = tpu.matmul %42, %12, %cst_23 {dimension_numbers = #tpu.dot_dimension_numbers<[1], [0], [0], [1], [0, 0, 1, 1], [], []>} : vector<16x32xbf16>, vector<32x128xbf16>, vector<16x128xf32> -> vector<16x128xf32>
    %51 = arith.extf %49 : vector<16x128xbf16> to vector<16x128xf32>
    %52 = arith.addf %51, %50 : vector<16x128xf32>
    %53 = arith.truncf %52 : vector<16x128xf32> to vector<16x128xbf16>
    %54 = vector.extract_strided_slice %53 {offsets = [0, 0], sizes = [16, 96], strides = [1, 1]} : vector<16x128xbf16> to vector<16x96xbf16>
    %55 = arith.negf %54 : vector<16x96xbf16>
    %56 = math.exp %55 : vector<16x96xbf16>
    %cst_24 = arith.constant 1.000000e+00 : bf16
    %57 = vector.broadcast %cst_24 : bf16 to vector<16x96xbf16>
    %58 = arith.addf %57, %56 : vector<16x96xbf16>
    %59 = arith.divf %57, %58 : vector<16x96xbf16>
    %60 = vector.extract_strided_slice %59 {offsets = [0, 0], sizes = [16, 32], strides = [1, 1]} : vector<16x96xbf16> to vector<16x32xbf16>
    %61 = vector.extract_strided_slice %59 {offsets = [0, 32], sizes = [16, 32], strides = [1, 1]} : vector<16x96xbf16> to vector<16x32xbf16>
    %62 = vector.extract_strided_slice %59 {offsets = [0, 64], sizes = [16, 32], strides = [1, 1]} : vector<16x96xbf16> to vector<16x32xbf16>
    %63 = vector.extract_strided_slice %53 {offsets = [0, 96], sizes = [16, 32], strides = [1, 1]} : vector<16x128xbf16> to vector<16x32xbf16>
    %64 = math.tanh %63 : vector<16x32xbf16>
    %65 = arith.extf %61 : vector<16x32xbf16> to vector<16x32xf32>
    %66 = arith.mulf %65, %38 : vector<16x32xf32>
    %67 = arith.extf %60 : vector<16x32xbf16> to vector<16x32xf32>
    %68 = arith.extf %64 : vector<16x32xbf16> to vector<16x32xf32>
    %69 = arith.mulf %67, %68 : vector<16x32xf32>
    %70 = arith.addf %66, %69 : vector<16x32xf32>
    %71 = arith.extf %62 : vector<16x32xbf16> to vector<16x32xf32>
    %72 = math.tanh %70 : vector<16x32xf32>
    %73 = arith.mulf %71, %72 : vector<16x32xf32>
    %74 = arith.truncf %73 : vector<16x32xf32> to vector<16x32xbf16>
    %75 = arith.index_cast %c1_i32 : i32 to index
    %c0_25 = arith.constant 0 : index
    %c0_26 = arith.constant 0 : index
    %76 = vector.load %arg10[%75, %c0_25, %c0_26] : memref<8x16x32xbf16, #tpu.memory_space<vmem>>, vector<1x16x32xbf16>
    %77 = vector.shape_cast %76 : vector<1x16x32xbf16> to vector<16x32xbf16>
    %78 = vector.shape_cast %74 : vector<16x32xbf16> to vector<1x16x32xbf16>
    tpu.vector_store %arg10[%75, %c0_25, %c0_26], %78 {strides = array<i32>} : memref<8x16x32xbf16, #tpu.memory_space<vmem>>, vector<1x16x32xbf16>,
    %c2_i32 = arith.constant 2 : i32
    %79 = arith.index_cast %c2_i32 : i32 to index
    %c0_27 = arith.constant 0 : index
    %c0_28 = arith.constant 0 : index
    %80 = vector.load %arg9[%79, %c0_27, %c0_28] : memref<8x16x128xbf16, #tpu.memory_space<vmem>>, vector<1x16x128xbf16>
    %81 = vector.shape_cast %80 : vector<1x16x128xbf16> to vector<16x128xbf16>
    %cst_29 = arith.constant dense<0.000000e+00> : vector<16x128xf32>
    %82 = tpu.matmul %74, %12, %cst_29 {dimension_numbers = #tpu.dot_dimension_numbers<[1], [0], [0], [1], [0, 0, 1, 1], [], []>} : vector<16x32xbf16>, vector<32x128xbf16>, vector<16x128xf32> -> vector<16x128xf32>
    %83 = arith.extf %81 : vector<16x128xbf16> to vector<16x128xf32>
    %84 = arith.addf %83, %82 : vector<16x128xf32>
    %85 = arith.truncf %84 : vector<16x128xf32> to vector<16x128xbf16>
    %86 = vector.extract_strided_slice %85 {offsets = [0, 0], sizes = [16, 96], strides = [1, 1]} : vector<16x128xbf16> to vector<16x96xbf16>
    %87 = arith.negf %86 : vector<16x96xbf16>
    %88 = math.exp %87 : vector<16x96xbf16>
    %cst_30 = arith.constant 1.000000e+00 : bf16
    %89 = vector.broadcast %cst_30 : bf16 to vector<16x96xbf16>
    %90 = arith.addf %89, %88 : vector<16x96xbf16>
    %91 = arith.divf %89, %90 : vector<16x96xbf16>
    %92 = vector.extract_strided_slice %91 {offsets = [0, 0], sizes = [16, 32], strides = [1, 1]} : vector<16x96xbf16> to vector<16x32xbf16>
    %93 = vector.extract_strided_slice %91 {offsets = [0, 32], sizes = [16, 32], strides = [1, 1]} : vector<16x96xbf16> to vector<16x32xbf16>
    %94 = vector.extract_strided_slice %91 {offsets = [0, 64], sizes = [16, 32], strides = [1, 1]} : vector<16x96xbf16> to vector<16x32xbf16>
    %95 = vector.extract_strided_slice %85 {offsets = [0, 96], sizes = [16, 32], strides = [1, 1]} : vector<16x128xbf16> to vector<16x32xbf16>
    %96 = math.tanh %95 : vector<16x32xbf16>
    %97 = arith.extf %93 : vector<16x32xbf16> to vector<16x32xf32>
    %98 = arith.mulf %97, %70 : vector<16x32xf32>
    %99 = arith.extf %92 : vector<16x32xbf16> to vector<16x32xf32>
    %100 = arith.extf %96 : vector<16x32xbf16> to vector<16x32xf32>
    %101 = arith.mulf %99, %100 : vector<16x32xf32>
    %102 = arith.addf %98, %101 : vector<16x32xf32>
    %103 = arith.extf %94 : vector<16x32xbf16> to vector<16x32xf32>
    %104 = math.tanh %102 : vector<16x32xf32>
    %105 = arith.mulf %103, %104 : vector<16x32xf32>
    %106 = arith.truncf %105 : vector<16x32xf32> to vector<16x32xbf16>
    %107 = arith.index_cast %c2_i32 : i32 to index
    %c0_31 = arith.constant 0 : index
    %c0_32 = arith.constant 0 : index
    %108 = vector.load %arg10[%107, %c0_31, %c0_32] : memref<8x16x32xbf16, #tpu.memory_space<vmem>>, vector<1x16x32xbf16>
    %109 = vector.shape_cast %108 : vector<1x16x32xbf16> to vector<16x32xbf16>
    %110 = vector.shape_cast %106 : vector<16x32xbf16> to vector<1x16x32xbf16>
    tpu.vector_store %arg10[%107, %c0_31, %c0_32], %110 {strides = array<i32>} : memref<8x16x32xbf16, #tpu.memory_space<vmem>>, vector<1x16x32xbf16>,
    %c3_i32 = arith.constant 3 : i32
    %111 = arith.index_cast %c3_i32 : i32 to index
    %c0_33 = arith.constant 0 : index
    %c0_34 = arith.constant 0 : index
    %112 = vector.load %arg9[%111, %c0_33, %c0_34] : memref<8x16x128xbf16, #tpu.memory_space<vmem>>, vector<1x16x128xbf16>
    %113 = vector.shape_cast %112 : vector<1x16x128xbf16> to vector<16x128xbf16>
    %cst_35 = arith.constant dense<0.000000e+00> : vector<16x128xf32>
    %114 = tpu.matmul %106, %12, %cst_35 {dimension_numbers = #tpu.dot_dimension_numbers<[1], [0], [0], [1], [0, 0, 1, 1], [], []>} : vector<16x32xbf16>, vector<32x128xbf16>, vector<16x128xf32> -> vector<16x128xf32>
    %115 = arith.extf %113 : vector<16x128xbf16> to vector<16x128xf32>
    %116 = arith.addf %115, %114 : vector<16x128xf32>
    %117 = arith.truncf %116 : vector<16x128xf32> to vector<16x128xbf16>
    %118 = vector.extract_strided_slice %117 {offsets = [0, 0], sizes = [16, 96], strides = [1, 1]} : vector<16x128xbf16> to vector<16x96xbf16>
    %119 = arith.negf %118 : vector<16x96xbf16>
    %120 = math.exp %119 : vector<16x96xbf16>
    %cst_36 = arith.constant 1.000000e+00 : bf16
    %121 = vector.broadcast %cst_36 : bf16 to vector<16x96xbf16>
    %122 = arith.addf %121, %120 : vector<16x96xbf16>
    %123 = arith.divf %121, %122 : vector<16x96xbf16>
    %124 = vector.extract_strided_slice %123 {offsets = [0, 0], sizes = [16, 32], strides = [1, 1]} : vector<16x96xbf16> to vector<16x32xbf16>
    %125 = vector.extract_strided_slice %123 {offsets = [0, 32], sizes = [16, 32], strides = [1, 1]} : vector<16x96xbf16> to vector<16x32xbf16>
    %126 = vector.extract_strided_slice %123 {offsets = [0, 64], sizes = [16, 32], strides = [1, 1]} : vector<16x96xbf16> to vector<16x32xbf16>
    %127 = vector.extract_strided_slice %117 {offsets = [0, 96], sizes = [16, 32], strides = [1, 1]} : vector<16x128xbf16> to vector<16x32xbf16>
    %128 = math.tanh %127 : vector<16x32xbf16>
    %129 = arith.extf %125 : vector<16x32xbf16> to vector<16x32xf32>
    %130 = arith.mulf %129, %102 : vector<16x32xf32>
    %131 = arith.extf %124 : vector<16x32xbf16> to vector<16x32xf32>
    %132 = arith.extf %128 : vector<16x32xbf16> to vector<16x32xf32>
    %133 = arith.mulf %131, %132 : vector<16x32xf32>
    %134 = arith.addf %130, %133 : vector<16x32xf32>
    %135 = arith.extf %126 : vector<16x32xbf16> to vector<16x32xf32>
    %136 = math.tanh %134 : vector<16x32xf32>
    %137 = arith.mulf %135, %136 : vector<16x32xf32>
    %138 = arith.truncf %137 : vector<16x32xf32> to vector<16x32xbf16>
    %139 = arith.index_cast %c3_i32 : i32 to index
    %c0_37 = arith.constant 0 : index
    %c0_38 = arith.constant 0 : index
    %140 = vector.load %arg10[%139, %c0_37, %c0_38] : memref<8x16x32xbf16, #tpu.memory_space<vmem>>, vector<1x16x32xbf16>
    %141 = vector.shape_cast %140 : vector<1x16x32xbf16> to vector<16x32xbf16>
    %142 = vector.shape_cast %138 : vector<16x32xbf16> to vector<1x16x32xbf16>
    tpu.vector_store %arg10[%139, %c0_37, %c0_38], %142 {strides = array<i32>} : memref<8x16x32xbf16, #tpu.memory_space<vmem>>, vector<1x16x32xbf16>,
    %c4_i32 = arith.constant 4 : i32
    %143 = arith.index_cast %c4_i32 : i32 to index
    %c0_39 = arith.constant 0 : index
    %c0_40 = arith.constant 0 : index
    %144 = vector.load %arg9[%143, %c0_39, %c0_40] : memref<8x16x128xbf16, #tpu.memory_space<vmem>>, vector<1x16x128xbf16>
    %145 = vector.shape_cast %144 : vector<1x16x128xbf16> to vector<16x128xbf16>
    %cst_41 = arith.constant dense<0.000000e+00> : vector<16x128xf32>
    %146 = tpu.matmul %138, %12, %cst_41 {dimension_numbers = #tpu.dot_dimension_numbers<[1], [0], [0], [1], [0, 0, 1, 1], [], []>} : vector<16x32xbf16>, vector<32x128xbf16>, vector<16x128xf32> -> vector<16x128xf32>
    %147 = arith.extf %145 : vector<16x128xbf16> to vector<16x128xf32>
    %148 = arith.addf %147, %146 : vector<16x128xf32>
    %149 = arith.truncf %148 : vector<16x128xf32> to vector<16x128xbf16>
    %150 = vector.extract_strided_slice %149 {offsets = [0, 0], sizes = [16, 96], strides = [1, 1]} : vector<16x128xbf16> to vector<16x96xbf16>
    %151 = arith.negf %150 : vector<16x96xbf16>
    %152 = math.exp %151 : vector<16x96xbf16>
    %cst_42 = arith.constant 1.000000e+00 : bf16
    %153 = vector.broadcast %cst_42 : bf16 to vector<16x96xbf16>
    %154 = arith.addf %153, %152 : vector<16x96xbf16>
    %155 = arith.divf %153, %154 : vector<16x96xbf16>
    %156 = vector.extract_strided_slice %155 {offsets = [0, 0], sizes = [16, 32], strides = [1, 1]} : vector<16x96xbf16> to vector<16x32xbf16>
    %157 = vector.extract_strided_slice %155 {offsets = [0, 32], sizes = [16, 32], strides = [1, 1]} : vector<16x96xbf16> to vector<16x32xbf16>
    %158 = vector.extract_strided_slice %155 {offsets = [0, 64], sizes = [16, 32], strides = [1, 1]} : vector<16x96xbf16> to vector<16x32xbf16>
    %159 = vector.extract_strided_slice %149 {offsets = [0, 96], sizes = [16, 32], strides = [1, 1]} : vector<16x128xbf16> to vector<16x32xbf16>
    %160 = math.tanh %159 : vector<16x32xbf16>
    %161 = arith.extf %157 : vector<16x32xbf16> to vector<16x32xf32>
    %162 = arith.mulf %161, %134 : vector<16x32xf32>
    %163 = arith.extf %156 : vector<16x32xbf16> to vector<16x32xf32>
    %164 = arith.extf %160 : vector<16x32xbf16> to vector<16x32xf32>
    %165 = arith.mulf %163, %164 : vector<16x32xf32>
    %166 = arith.addf %162, %165 : vector<16x32xf32>
    %167 = arith.extf %158 : vector<16x32xbf16> to vector<16x32xf32>
    %168 = math.tanh %166 : vector<16x32xf32>
    %169 = arith.mulf %167, %168 : vector<16x32xf32>
    %170 = arith.truncf %169 : vector<16x32xf32> to vector<16x32xbf16>
    %171 = arith.index_cast %c4_i32 : i32 to index
    %c0_43 = arith.constant 0 : index
    %c0_44 = arith.constant 0 : index
    %172 = vector.load %arg10[%171, %c0_43, %c0_44] : memref<8x16x32xbf16, #tpu.memory_space<vmem>>, vector<1x16x32xbf16>
    %173 = vector.shape_cast %172 : vector<1x16x32xbf16> to vector<16x32xbf16>
    %174 = vector.shape_cast %170 : vector<16x32xbf16> to vector<1x16x32xbf16>
    tpu.vector_store %arg10[%171, %c0_43, %c0_44], %174 {strides = array<i32>} : memref<8x16x32xbf16, #tpu.memory_space<vmem>>, vector<1x16x32xbf16>,
    %c5_i32 = arith.constant 5 : i32
    %175 = arith.index_cast %c5_i32 : i32 to index
    %c0_45 = arith.constant 0 : index
    %c0_46 = arith.constant 0 : index
    %176 = vector.load %arg9[%175, %c0_45, %c0_46] : memref<8x16x128xbf16, #tpu.memory_space<vmem>>, vector<1x16x128xbf16>
    %177 = vector.shape_cast %176 : vector<1x16x128xbf16> to vector<16x128xbf16>
    %cst_47 = arith.constant dense<0.000000e+00> : vector<16x128xf32>
    %178 = tpu.matmul %170, %12, %cst_47 {dimension_numbers = #tpu.dot_dimension_numbers<[1], [0], [0], [1], [0, 0, 1, 1], [], []>} : vector<16x32xbf16>, vector<32x128xbf16>, vector<16x128xf32> -> vector<16x128xf32>
    %179 = arith.extf %177 : vector<16x128xbf16> to vector<16x128xf32>
    %180 = arith.addf %179, %178 : vector<16x128xf32>
    %181 = arith.truncf %180 : vector<16x128xf32> to vector<16x128xbf16>
    %182 = vector.extract_strided_slice %181 {offsets = [0, 0], sizes = [16, 96], strides = [1, 1]} : vector<16x128xbf16> to vector<16x96xbf16>
    %183 = arith.negf %182 : vector<16x96xbf16>
    %184 = math.exp %183 : vector<16x96xbf16>
    %cst_48 = arith.constant 1.000000e+00 : bf16
    %185 = vector.broadcast %cst_48 : bf16 to vector<16x96xbf16>
    %186 = arith.addf %185, %184 : vector<16x96xbf16>
    %187 = arith.divf %185, %186 : vector<16x96xbf16>
    %188 = vector.extract_strided_slice %187 {offsets = [0, 0], sizes = [16, 32], strides = [1, 1]} : vector<16x96xbf16> to vector<16x32xbf16>
    %189 = vector.extract_strided_slice %187 {offsets = [0, 32], sizes = [16, 32], strides = [1, 1]} : vector<16x96xbf16> to vector<16x32xbf16>
    %190 = vector.extract_strided_slice %187 {offsets = [0, 64], sizes = [16, 32], strides = [1, 1]} : vector<16x96xbf16> to vector<16x32xbf16>
    %191 = vector.extract_strided_slice %181 {offsets = [0, 96], sizes = [16, 32], strides = [1, 1]} : vector<16x128xbf16> to vector<16x32xbf16>
    %192 = math.tanh %191 : vector<16x32xbf16>
    %193 = arith.extf %189 : vector<16x32xbf16> to vector<16x32xf32>
    %194 = arith.mulf %193, %166 : vector<16x32xf32>
    %195 = arith.extf %188 : vector<16x32xbf16> to vector<16x32xf32>
    %196 = arith.extf %192 : vector<16x32xbf16> to vector<16x32xf32>
    %197 = arith.mulf %195, %196 : vector<16x32xf32>
    %198 = arith.addf %194, %197 : vector<16x32xf32>
    %199 = arith.extf %190 : vector<16x32xbf16> to vector<16x32xf32>
    %200 = math.tanh %198 : vector<16x32xf32>
    %201 = arith.mulf %199, %200 : vector<16x32xf32>
    %202 = arith.truncf %201 : vector<16x32xf32> to vector<16x32xbf16>
    %203 = arith.index_cast %c5_i32 : i32 to index
    %c0_49 = arith.constant 0 : index
    %c0_50 = arith.constant 0 : index
    %204 = vector.load %arg10[%203, %c0_49, %c0_50] : memref<8x16x32xbf16, #tpu.memory_space<vmem>>, vector<1x16x32xbf16>
    %205 = vector.shape_cast %204 : vector<1x16x32xbf16> to vector<16x32xbf16>
    %206 = vector.shape_cast %202 : vector<16x32xbf16> to vector<1x16x32xbf16>
    tpu.vector_store %arg10[%203, %c0_49, %c0_50], %206 {strides = array<i32>} : memref<8x16x32xbf16, #tpu.memory_space<vmem>>, vector<1x16x32xbf16>,
    %c6_i32 = arith.constant 6 : i32
    %207 = arith.index_cast %c6_i32 : i32 to index
    %c0_51 = arith.constant 0 : index
    %c0_52 = arith.constant 0 : index
    %208 = vector.load %arg9[%207, %c0_51, %c0_52] : memref<8x16x128xbf16, #tpu.memory_space<vmem>>, vector<1x16x128xbf16>
    %209 = vector.shape_cast %208 : vector<1x16x128xbf16> to vector<16x128xbf16>
    %cst_53 = arith.constant dense<0.000000e+00> : vector<16x128xf32>
    %210 = tpu.matmul %202, %12, %cst_53 {dimension_numbers = #tpu.dot_dimension_numbers<[1], [0], [0], [1], [0, 0, 1, 1], [], []>} : vector<16x32xbf16>, vector<32x128xbf16>, vector<16x128xf32> -> vector<16x128xf32>
    %211 = arith.extf %209 : vector<16x128xbf16> to vector<16x128xf32>
    %212 = arith.addf %211, %210 : vector<16x128xf32>
    %213 = arith.truncf %212 : vector<16x128xf32> to vector<16x128xbf16>
    %214 = vector.extract_strided_slice %213 {offsets = [0, 0], sizes = [16, 96], strides = [1, 1]} : vector<16x128xbf16> to vector<16x96xbf16>
    %215 = arith.negf %214 : vector<16x96xbf16>
    %216 = math.exp %215 : vector<16x96xbf16>
    %cst_54 = arith.constant 1.000000e+00 : bf16
    %217 = vector.broadcast %cst_54 : bf16 to vector<16x96xbf16>
    %218 = arith.addf %217, %216 : vector<16x96xbf16>
    %219 = arith.divf %217, %218 : vector<16x96xbf16>
    %220 = vector.extract_strided_slice %219 {offsets = [0, 0], sizes = [16, 32], strides = [1, 1]} : vector<16x96xbf16> to vector<16x32xbf16>
    %221 = vector.extract_strided_slice %219 {offsets = [0, 32], sizes = [16, 32], strides = [1, 1]} : vector<16x96xbf16> to vector<16x32xbf16>
    %222 = vector.extract_strided_slice %219 {offsets = [0, 64], sizes = [16, 32], strides = [1, 1]} : vector<16x96xbf16> to vector<16x32xbf16>
    %223 = vector.extract_strided_slice %213 {offsets = [0, 96], sizes = [16, 32], strides = [1, 1]} : vector<16x128xbf16> to vector<16x32xbf16>
    %224 = math.tanh %223 : vector<16x32xbf16>
    %225 = arith.extf %221 : vector<16x32xbf16> to vector<16x32xf32>
    %226 = arith.mulf %225, %198 : vector<16x32xf32>
    %227 = arith.extf %220 : vector<16x32xbf16> to vector<16x32xf32>
    %228 = arith.extf %224 : vector<16x32xbf16> to vector<16x32xf32>
    %229 = arith.mulf %227, %228 : vector<16x32xf32>
    %230 = arith.addf %226, %229 : vector<16x32xf32>
    %231 = arith.extf %222 : vector<16x32xbf16> to vector<16x32xf32>
    %232 = math.tanh %230 : vector<16x32xf32>
    %233 = arith.mulf %231, %232 : vector<16x32xf32>
    %234 = arith.truncf %233 : vector<16x32xf32> to vector<16x32xbf16>
    %235 = arith.index_cast %c6_i32 : i32 to index
    %c0_55 = arith.constant 0 : index
    %c0_56 = arith.constant 0 : index
    %236 = vector.load %arg10[%235, %c0_55, %c0_56] : memref<8x16x32xbf16, #tpu.memory_space<vmem>>, vector<1x16x32xbf16>
    %237 = vector.shape_cast %236 : vector<1x16x32xbf16> to vector<16x32xbf16>
    %238 = vector.shape_cast %234 : vector<16x32xbf16> to vector<1x16x32xbf16>
    tpu.vector_store %arg10[%235, %c0_55, %c0_56], %238 {strides = array<i32>} : memref<8x16x32xbf16, #tpu.memory_space<vmem>>, vector<1x16x32xbf16>,
    %c7_i32 = arith.constant 7 : i32
    %239 = arith.index_cast %c7_i32 : i32 to index
    %c0_57 = arith.constant 0 : index
    %c0_58 = arith.constant 0 : index
    %240 = vector.load %arg9[%239, %c0_57, %c0_58] : memref<8x16x128xbf16, #tpu.memory_space<vmem>>, vector<1x16x128xbf16>
    %241 = vector.shape_cast %240 : vector<1x16x128xbf16> to vector<16x128xbf16>
    %cst_59 = arith.constant dense<0.000000e+00> : vector<16x128xf32>
    %242 = tpu.matmul %234, %12, %cst_59 {dimension_numbers = #tpu.dot_dimension_numbers<[1], [0], [0], [1], [0, 0, 1, 1], [], []>} : vector<16x32xbf16>, vector<32x128xbf16>, vector<16x128xf32> -> vector<16x128xf32>
    %243 = arith.extf %241 : vector<16x128xbf16> to vector<16x128xf32>
    %244 = arith.addf %243, %242 : vector<16x128xf32>
    %245 = arith.truncf %244 : vector<16x128xf32> to vector<16x128xbf16>
    %246 = vector.extract_strided_slice %245 {offsets = [0, 0], sizes = [16, 96], strides = [1, 1]} : vector<16x128xbf16> to vector<16x96xbf16>
    %247 = arith.negf %246 : vector<16x96xbf16>
    %248 = math.exp %247 : vector<16x96xbf16>
    %cst_60 = arith.constant 1.000000e+00 : bf16
    %249 = vector.broadcast %cst_60 : bf16 to vector<16x96xbf16>
    %250 = arith.addf %249, %248 : vector<16x96xbf16>
    %251 = arith.divf %249, %250 : vector<16x96xbf16>
    %252 = vector.extract_strided_slice %251 {offsets = [0, 0], sizes = [16, 32], strides = [1, 1]} : vector<16x96xbf16> to vector<16x32xbf16>
    %253 = vector.extract_strided_slice %251 {offsets = [0, 32], sizes = [16, 32], strides = [1, 1]} : vector<16x96xbf16> to vector<16x32xbf16>
    %254 = vector.extract_strided_slice %251 {offsets = [0, 64], sizes = [16, 32], strides = [1, 1]} : vector<16x96xbf16> to vector<16x32xbf16>
    %255 = vector.extract_strided_slice %245 {offsets = [0, 96], sizes = [16, 32], strides = [1, 1]} : vector<16x128xbf16> to vector<16x32xbf16>
    %256 = math.tanh %255 : vector<16x32xbf16>
    %257 = arith.extf %253 : vector<16x32xbf16> to vector<16x32xf32>
    %258 = arith.mulf %257, %230 : vector<16x32xf32>
    %259 = arith.extf %252 : vector<16x32xbf16> to vector<16x32xf32>
    %260 = arith.extf %256 : vector<16x32xbf16> to vector<16x32xf32>
    %261 = arith.mulf %259, %260 : vector<16x32xf32>
    %262 = arith.addf %258, %261 : vector<16x32xf32>
    %263 = arith.extf %254 : vector<16x32xbf16> to vector<16x32xf32>
    %264 = math.tanh %262 : vector<16x32xf32>
    %265 = arith.mulf %263, %264 : vector<16x32xf32>
    %266 = arith.truncf %265 : vector<16x32xf32> to vector<16x32xbf16>
    %267 = arith.index_cast %c7_i32 : i32 to index
    %c0_61 = arith.constant 0 : index
    %c0_62 = arith.constant 0 : index
    %268 = vector.load %arg10[%267, %c0_61, %c0_62] : memref<8x16x32xbf16, #tpu.memory_space<vmem>>, vector<1x16x32xbf16>
    %269 = vector.shape_cast %268 : vector<1x16x32xbf16> to vector<16x32xbf16>
    %270 = vector.shape_cast %266 : vector<16x32xbf16> to vector<1x16x32xbf16>
    tpu.vector_store %arg10[%267, %c0_61, %c0_62], %270 {strides = array<i32>} : memref<8x16x32xbf16, #tpu.memory_space<vmem>>, vector<1x16x32xbf16>,
    %c8_i32 = arith.constant 8 : i32
    %c0_63 = arith.constant 0 : index
    %c0_64 = arith.constant 0 : index
    %c0_65 = arith.constant 0 : index
    %271 = vector.load %arg10[%c0_63, %c0_64, %c0_65] : memref<8x16x32xbf16, #tpu.memory_space<vmem>>, vector<8x16x32xbf16>
    %272 = vector.shape_cast %271 : vector<8x16x32xbf16> to vector<128x32xbf16>
    %c0_66 = arith.constant 0 : index
    %c0_67 = arith.constant 0 : index
    %c0_68 = arith.constant 0 : index
    %273 = vector.load %arg3[%c0_66, %c0_67, %c0_68] : memref<1x32x128xbf16, #tpu.memory_space<vmem>>, vector<1x32x128xbf16>
    %274 = vector.shape_cast %273 : vector<1x32x128xbf16> to vector<32x128xbf16>
    %cst_69 = arith.constant dense<0.000000e+00> : vector<128x128xf32>
    %275 = tpu.matmul %272, %274, %cst_69 {dimension_numbers = #tpu.dot_dimension_numbers<[1], [0], [0], [1], [0, 0, 1, 1], [], []>} : vector<128x32xbf16>, vector<32x128xbf16>, vector<128x128xf32> -> vector<128x128xf32>
    %c1 = arith.constant 1 : index
    %c0_70 = arith.constant 0 : index
    %c0_71 = arith.constant 0 : index
    %276 = vector.load %arg5[%c1, %c0_70, %c0_71] : memref<2x1x128xf32, #tpu.memory_space<vmem>>, vector<1x1x128xf32>
    %277 = vector.shape_cast %276 : vector<1x1x128xf32> to vector<1x128xf32>
    %278 = vector.broadcast %277 : vector<1x128xf32> to vector<128x128xf32>
    %279 = arith.addf %275, %278 : vector<128x128xf32>
    %280 = vector.shape_cast %279 : vector<128x128xf32> to vector<8x16x128xf32>
    %281 = arith.truncf %280 : vector<8x16x128xf32> to vector<8x16x128xbf16>
    %c0_72 = arith.constant 0 : index
    %c0_73 = arith.constant 0 : index
    %c0_74 = arith.constant 0 : index
    %282 = vector.load %arg9[%c0_72, %c0_73, %c0_74] : memref<8x16x128xbf16, #tpu.memory_space<vmem>>, vector<8x16x128xbf16>
    tpu.vector_store %arg9[%c0_72, %c0_73, %c0_74], %281 {strides = array<i32>} : memref<8x16x128xbf16, #tpu.memory_space<vmem>>, vector<8x16x128xbf16>,
    %c1_75 = arith.constant 1 : index
    %c0_76 = arith.constant 0 : index
    %c0_77 = arith.constant 0 : index
    %283 = vector.load %arg4[%c1_75, %c0_76, %c0_77] : memref<2x32x128xbf16, #tpu.memory_space<vmem>>, vector<1x32x128xbf16>
    %284 = vector.shape_cast %283 : vector<1x32x128xbf16> to vector<32x128xbf16>
    %cst_78 = arith.constant 0.000000e+00 : bf16
    %285 = vector.broadcast %cst_78 : bf16 to vector<16x32xbf16>
    %cst_79 = arith.constant 0.000000e+00 : f32
    %286 = vector.broadcast %cst_79 : f32 to vector<16x32xf32>
    %c0_i32_80 = arith.constant 0 : i32
    %287 = arith.index_cast %c0_i32_80 : i32 to index
    %c0_81 = arith.constant 0 : index
    %c0_82 = arith.constant 0 : index
    %288 = vector.load %arg9[%287, %c0_81, %c0_82] : memref<8x16x128xbf16, #tpu.memory_space<vmem>>, vector<1x16x128xbf16>
    %289 = vector.shape_cast %288 : vector<1x16x128xbf16> to vector<16x128xbf16>
    %cst_83 = arith.constant dense<0.000000e+00> : vector<16x128xf32>
    %290 = tpu.matmul %285, %284, %cst_83 {dimension_numbers = #tpu.dot_dimension_numbers<[1], [0], [0], [1], [0, 0, 1, 1], [], []>} : vector<16x32xbf16>, vector<32x128xbf16>, vector<16x128xf32> -> vector<16x128xf32>
    %291 = arith.extf %289 : vector<16x128xbf16> to vector<16x128xf32>
    %292 = arith.addf %291, %290 : vector<16x128xf32>
    %293 = arith.truncf %292 : vector<16x128xf32> to vector<16x128xbf16>
    %294 = vector.extract_strided_slice %293 {offsets = [0, 0], sizes = [16, 96], strides = [1, 1]} : vector<16x128xbf16> to vector<16x96xbf16>
    %295 = arith.negf %294 : vector<16x96xbf16>
    %296 = math.exp %295 : vector<16x96xbf16>
    %cst_84 = arith.constant 1.000000e+00 : bf16
    %297 = vector.broadcast %cst_84 : bf16 to vector<16x96xbf16>
    %298 = arith.addf %297, %296 : vector<16x96xbf16>
    %299 = arith.divf %297, %298 : vector<16x96xbf16>
    %300 = vector.extract_strided_slice %299 {offsets = [0, 0], sizes = [16, 32], strides = [1, 1]} : vector<16x96xbf16> to vector<16x32xbf16>
    %301 = vector.extract_strided_slice %299 {offsets = [0, 32], sizes = [16, 32], strides = [1, 1]} : vector<16x96xbf16> to vector<16x32xbf16>
    %302 = vector.extract_strided_slice %299 {offsets = [0, 64], sizes = [16, 32], strides = [1, 1]} : vector<16x96xbf16> to vector<16x32xbf16>
    %303 = vector.extract_strided_slice %293 {offsets = [0, 96], sizes = [16, 32], strides = [1, 1]} : vector<16x128xbf16> to vector<16x32xbf16>
    %304 = math.tanh %303 : vector<16x32xbf16>
    %305 = arith.extf %301 : vector<16x32xbf16> to vector<16x32xf32>
    %306 = arith.mulf %305, %286 : vector<16x32xf32>
    %307 = arith.extf %300 : vector<16x32xbf16> to vector<16x32xf32>
    %308 = arith.extf %304 : vector<16x32xbf16> to vector<16x32xf32>
    %309 = arith.mulf %307, %308 : vector<16x32xf32>
    %310 = arith.addf %306, %309 : vector<16x32xf32>
    %311 = arith.extf %302 : vector<16x32xbf16> to vector<16x32xf32>
    %312 = math.tanh %310 : vector<16x32xf32>
    %313 = arith.mulf %311, %312 : vector<16x32xf32>
    %314 = arith.truncf %313 : vector<16x32xf32> to vector<16x32xbf16>
    %c1_i32_85 = arith.constant 1 : i32
    %315 = arith.index_cast %c1_i32_85 : i32 to index
    %c0_86 = arith.constant 0 : index
    %c0_87 = arith.constant 0 : index
    %316 = vector.load %arg9[%315, %c0_86, %c0_87] : memref<8x16x128xbf16, #tpu.memory_space<vmem>>, vector<1x16x128xbf16>
    %317 = vector.shape_cast %316 : vector<1x16x128xbf16> to vector<16x128xbf16>
    %cst_88 = arith.constant dense<0.000000e+00> : vector<16x128xf32>
    %318 = tpu.matmul %314, %284, %cst_88 {dimension_numbers = #tpu.dot_dimension_numbers<[1], [0], [0], [1], [0, 0, 1, 1], [], []>} : vector<16x32xbf16>, vector<32x128xbf16>, vector<16x128xf32> -> vector<16x128xf32>
    %319 = arith.extf %317 : vector<16x128xbf16> to vector<16x128xf32>
    %320 = arith.addf %319, %318 : vector<16x128xf32>
    %321 = arith.truncf %320 : vector<16x128xf32> to vector<16x128xbf16>
    %322 = vector.extract_strided_slice %321 {offsets = [0, 0], sizes = [16, 96], strides = [1, 1]} : vector<16x128xbf16> to vector<16x96xbf16>
    %323 = arith.negf %322 : vector<16x96xbf16>
    %324 = math.exp %323 : vector<16x96xbf16>
    %cst_89 = arith.constant 1.000000e+00 : bf16
    %325 = vector.broadcast %cst_89 : bf16 to vector<16x96xbf16>
    %326 = arith.addf %325, %324 : vector<16x96xbf16>
    %327 = arith.divf %325, %326 : vector<16x96xbf16>
    %328 = vector.extract_strided_slice %327 {offsets = [0, 0], sizes = [16, 32], strides = [1, 1]} : vector<16x96xbf16> to vector<16x32xbf16>
    %329 = vector.extract_strided_slice %327 {offsets = [0, 32], sizes = [16, 32], strides = [1, 1]} : vector<16x96xbf16> to vector<16x32xbf16>
    %330 = vector.extract_strided_slice %327 {offsets = [0, 64], sizes = [16, 32], strides = [1, 1]} : vector<16x96xbf16> to vector<16x32xbf16>
    %331 = vector.extract_strided_slice %321 {offsets = [0, 96], sizes = [16, 32], strides = [1, 1]} : vector<16x128xbf16> to vector<16x32xbf16>
    %332 = math.tanh %331 : vector<16x32xbf16>
    %333 = arith.extf %329 : vector<16x32xbf16> to vector<16x32xf32>
    %334 = arith.mulf %333, %310 : vector<16x32xf32>
    %335 = arith.extf %328 : vector<16x32xbf16> to vector<16x32xf32>
    %336 = arith.extf %332 : vector<16x32xbf16> to vector<16x32xf32>
    %337 = arith.mulf %335, %336 : vector<16x32xf32>
    %338 = arith.addf %334, %337 : vector<16x32xf32>
    %339 = arith.extf %330 : vector<16x32xbf16> to vector<16x32xf32>
    %340 = math.tanh %338 : vector<16x32xf32>
    %341 = arith.mulf %339, %340 : vector<16x32xf32>
    %342 = arith.truncf %341 : vector<16x32xf32> to vector<16x32xbf16>
    %c2_i32_90 = arith.constant 2 : i32
    %343 = arith.index_cast %c2_i32_90 : i32 to index
    %c0_91 = arith.constant 0 : index
    %c0_92 = arith.constant 0 : index
    %344 = vector.load %arg9[%343, %c0_91, %c0_92] : memref<8x16x128xbf16, #tpu.memory_space<vmem>>, vector<1x16x128xbf16>
    %345 = vector.shape_cast %344 : vector<1x16x128xbf16> to vector<16x128xbf16>
    %cst_93 = arith.constant dense<0.000000e+00> : vector<16x128xf32>
    %346 = tpu.matmul %342, %284, %cst_93 {dimension_numbers = #tpu.dot_dimension_numbers<[1], [0], [0], [1], [0, 0, 1, 1], [], []>} : vector<16x32xbf16>, vector<32x128xbf16>, vector<16x128xf32> -> vector<16x128xf32>
    %347 = arith.extf %345 : vector<16x128xbf16> to vector<16x128xf32>
    %348 = arith.addf %347, %346 : vector<16x128xf32>
    %349 = arith.truncf %348 : vector<16x128xf32> to vector<16x128xbf16>
    %350 = vector.extract_strided_slice %349 {offsets = [0, 0], sizes = [16, 96], strides = [1, 1]} : vector<16x128xbf16> to vector<16x96xbf16>
    %351 = arith.negf %350 : vector<16x96xbf16>
    %352 = math.exp %351 : vector<16x96xbf16>
    %cst_94 = arith.constant 1.000000e+00 : bf16
    %353 = vector.broadcast %cst_94 : bf16 to vector<16x96xbf16>
    %354 = arith.addf %353, %352 : vector<16x96xbf16>
    %355 = arith.divf %353, %354 : vector<16x96xbf16>
    %356 = vector.extract_strided_slice %355 {offsets = [0, 0], sizes = [16, 32], strides = [1, 1]} : vector<16x96xbf16> to vector<16x32xbf16>
    %357 = vector.extract_strided_slice %355 {offsets = [0, 32], sizes = [16, 32], strides = [1, 1]} : vector<16x96xbf16> to vector<16x32xbf16>
    %358 = vector.extract_strided_slice %355 {offsets = [0, 64], sizes = [16, 32], strides = [1, 1]} : vector<16x96xbf16> to vector<16x32xbf16>
    %359 = vector.extract_strided_slice %349 {offsets = [0, 96], sizes = [16, 32], strides = [1, 1]} : vector<16x128xbf16> to vector<16x32xbf16>
    %360 = math.tanh %359 : vector<16x32xbf16>
    %361 = arith.extf %357 : vector<16x32xbf16> to vector<16x32xf32>
    %362 = arith.mulf %361, %338 : vector<16x32xf32>
    %363 = arith.extf %356 : vector<16x32xbf16> to vector<16x32xf32>
    %364 = arith.extf %360 : vector<16x32xbf16> to vector<16x32xf32>
    %365 = arith.mulf %363, %364 : vector<16x32xf32>
    %366 = arith.addf %362, %365 : vector<16x32xf32>
    %367 = arith.extf %358 : vector<16x32xbf16> to vector<16x32xf32>
    %368 = math.tanh %366 : vector<16x32xf32>
    %369 = arith.mulf %367, %368 : vector<16x32xf32>
    %370 = arith.truncf %369 : vector<16x32xf32> to vector<16x32xbf16>
    %c3_i32_95 = arith.constant 3 : i32
    %371 = arith.index_cast %c3_i32_95 : i32 to index
    %c0_96 = arith.constant 0 : index
    %c0_97 = arith.constant 0 : index
    %372 = vector.load %arg9[%371, %c0_96, %c0_97] : memref<8x16x128xbf16, #tpu.memory_space<vmem>>, vector<1x16x128xbf16>
    %373 = vector.shape_cast %372 : vector<1x16x128xbf16> to vector<16x128xbf16>
    %cst_98 = arith.constant dense<0.000000e+00> : vector<16x128xf32>
    %374 = tpu.matmul %370, %284, %cst_98 {dimension_numbers = #tpu.dot_dimension_numbers<[1], [0], [0], [1], [0, 0, 1, 1], [], []>} : vector<16x32xbf16>, vector<32x128xbf16>, vector<16x128xf32> -> vector<16x128xf32>
    %375 = arith.extf %373 : vector<16x128xbf16> to vector<16x128xf32>
    %376 = arith.addf %375, %374 : vector<16x128xf32>
    %377 = arith.truncf %376 : vector<16x128xf32> to vector<16x128xbf16>
    %378 = vector.extract_strided_slice %377 {offsets = [0, 0], sizes = [16, 96], strides = [1, 1]} : vector<16x128xbf16> to vector<16x96xbf16>
    %379 = arith.negf %378 : vector<16x96xbf16>
    %380 = math.exp %379 : vector<16x96xbf16>
    %cst_99 = arith.constant 1.000000e+00 : bf16
    %381 = vector.broadcast %cst_99 : bf16 to vector<16x96xbf16>
    %382 = arith.addf %381, %380 : vector<16x96xbf16>
    %383 = arith.divf %381, %382 : vector<16x96xbf16>
    %384 = vector.extract_strided_slice %383 {offsets = [0, 0], sizes = [16, 32], strides = [1, 1]} : vector<16x96xbf16> to vector<16x32xbf16>
    %385 = vector.extract_strided_slice %383 {offsets = [0, 32], sizes = [16, 32], strides = [1, 1]} : vector<16x96xbf16> to vector<16x32xbf16>
    %386 = vector.extract_strided_slice %383 {offsets = [0, 64], sizes = [16, 32], strides = [1, 1]} : vector<16x96xbf16> to vector<16x32xbf16>
    %387 = vector.extract_strided_slice %377 {offsets = [0, 96], sizes = [16, 32], strides = [1, 1]} : vector<16x128xbf16> to vector<16x32xbf16>
    %388 = math.tanh %387 : vector<16x32xbf16>
    %389 = arith.extf %385 : vector<16x32xbf16> to vector<16x32xf32>
    %390 = arith.mulf %389, %366 : vector<16x32xf32>
    %391 = arith.extf %384 : vector<16x32xbf16> to vector<16x32xf32>
    %392 = arith.extf %388 : vector<16x32xbf16> to vector<16x32xf32>
    %393 = arith.mulf %391, %392 : vector<16x32xf32>
    %394 = arith.addf %390, %393 : vector<16x32xf32>
    %395 = arith.extf %386 : vector<16x32xbf16> to vector<16x32xf32>
    %396 = math.tanh %394 : vector<16x32xf32>
    %397 = arith.mulf %395, %396 : vector<16x32xf32>
    %398 = arith.truncf %397 : vector<16x32xf32> to vector<16x32xbf16>
    %c4_i32_100 = arith.constant 4 : i32
    %399 = arith.index_cast %c4_i32_100 : i32 to index
    %c0_101 = arith.constant 0 : index
    %c0_102 = arith.constant 0 : index
    %400 = vector.load %arg9[%399, %c0_101, %c0_102] : memref<8x16x128xbf16, #tpu.memory_space<vmem>>, vector<1x16x128xbf16>
    %401 = vector.shape_cast %400 : vector<1x16x128xbf16> to vector<16x128xbf16>
    %cst_103 = arith.constant dense<0.000000e+00> : vector<16x128xf32>
    %402 = tpu.matmul %398, %284, %cst_103 {dimension_numbers = #tpu.dot_dimension_numbers<[1], [0], [0], [1], [0, 0, 1, 1], [], []>} : vector<16x32xbf16>, vector<32x128xbf16>, vector<16x128xf32> -> vector<16x128xf32>
    %403 = arith.extf %401 : vector<16x128xbf16> to vector<16x128xf32>
    %404 = arith.addf %403, %402 : vector<16x128xf32>
    %405 = arith.truncf %404 : vector<16x128xf32> to vector<16x128xbf16>
    %406 = vector.extract_strided_slice %405 {offsets = [0, 0], sizes = [16, 96], strides = [1, 1]} : vector<16x128xbf16> to vector<16x96xbf16>
    %407 = arith.negf %406 : vector<16x96xbf16>
    %408 = math.exp %407 : vector<16x96xbf16>
    %cst_104 = arith.constant 1.000000e+00 : bf16
    %409 = vector.broadcast %cst_104 : bf16 to vector<16x96xbf16>
    %410 = arith.addf %409, %408 : vector<16x96xbf16>
    %411 = arith.divf %409, %410 : vector<16x96xbf16>
    %412 = vector.extract_strided_slice %411 {offsets = [0, 0], sizes = [16, 32], strides = [1, 1]} : vector<16x96xbf16> to vector<16x32xbf16>
    %413 = vector.extract_strided_slice %411 {offsets = [0, 32], sizes = [16, 32], strides = [1, 1]} : vector<16x96xbf16> to vector<16x32xbf16>
    %414 = vector.extract_strided_slice %411 {offsets = [0, 64], sizes = [16, 32], strides = [1, 1]} : vector<16x96xbf16> to vector<16x32xbf16>
    %415 = vector.extract_strided_slice %405 {offsets = [0, 96], sizes = [16, 32], strides = [1, 1]} : vector<16x128xbf16> to vector<16x32xbf16>
    %416 = math.tanh %415 : vector<16x32xbf16>
    %417 = arith.extf %413 : vector<16x32xbf16> to vector<16x32xf32>
    %418 = arith.mulf %417, %394 : vector<16x32xf32>
    %419 = arith.extf %412 : vector<16x32xbf16> to vector<16x32xf32>
    %420 = arith.extf %416 : vector<16x32xbf16> to vector<16x32xf32>
    %421 = arith.mulf %419, %420 : vector<16x32xf32>
    %422 = arith.addf %418, %421 : vector<16x32xf32>
    %423 = arith.extf %414 : vector<16x32xbf16> to vector<16x32xf32>
    %424 = math.tanh %422 : vector<16x32xf32>
    %425 = arith.mulf %423, %424 : vector<16x32xf32>
    %426 = arith.truncf %425 : vector<16x32xf32> to vector<16x32xbf16>
    %c5_i32_105 = arith.constant 5 : i32
    %427 = arith.index_cast %c5_i32_105 : i32 to index
    %c0_106 = arith.constant 0 : index
    %c0_107 = arith.constant 0 : index
    %428 = vector.load %arg9[%427, %c0_106, %c0_107] : memref<8x16x128xbf16, #tpu.memory_space<vmem>>, vector<1x16x128xbf16>
    %429 = vector.shape_cast %428 : vector<1x16x128xbf16> to vector<16x128xbf16>
    %cst_108 = arith.constant dense<0.000000e+00> : vector<16x128xf32>
    %430 = tpu.matmul %426, %284, %cst_108 {dimension_numbers = #tpu.dot_dimension_numbers<[1], [0], [0], [1], [0, 0, 1, 1], [], []>} : vector<16x32xbf16>, vector<32x128xbf16>, vector<16x128xf32> -> vector<16x128xf32>
    %431 = arith.extf %429 : vector<16x128xbf16> to vector<16x128xf32>
    %432 = arith.addf %431, %430 : vector<16x128xf32>
    %433 = arith.truncf %432 : vector<16x128xf32> to vector<16x128xbf16>
    %434 = vector.extract_strided_slice %433 {offsets = [0, 0], sizes = [16, 96], strides = [1, 1]} : vector<16x128xbf16> to vector<16x96xbf16>
    %435 = arith.negf %434 : vector<16x96xbf16>
    %436 = math.exp %435 : vector<16x96xbf16>
    %cst_109 = arith.constant 1.000000e+00 : bf16
    %437 = vector.broadcast %cst_109 : bf16 to vector<16x96xbf16>
    %438 = arith.addf %437, %436 : vector<16x96xbf16>
    %439 = arith.divf %437, %438 : vector<16x96xbf16>
    %440 = vector.extract_strided_slice %439 {offsets = [0, 0], sizes = [16, 32], strides = [1, 1]} : vector<16x96xbf16> to vector<16x32xbf16>
    %441 = vector.extract_strided_slice %439 {offsets = [0, 32], sizes = [16, 32], strides = [1, 1]} : vector<16x96xbf16> to vector<16x32xbf16>
    %442 = vector.extract_strided_slice %439 {offsets = [0, 64], sizes = [16, 32], strides = [1, 1]} : vector<16x96xbf16> to vector<16x32xbf16>
    %443 = vector.extract_strided_slice %433 {offsets = [0, 96], sizes = [16, 32], strides = [1, 1]} : vector<16x128xbf16> to vector<16x32xbf16>
    %444 = math.tanh %443 : vector<16x32xbf16>
    %445 = arith.extf %441 : vector<16x32xbf16> to vector<16x32xf32>
    %446 = arith.mulf %445, %422 : vector<16x32xf32>
    %447 = arith.extf %440 : vector<16x32xbf16> to vector<16x32xf32>
    %448 = arith.extf %444 : vector<16x32xbf16> to vector<16x32xf32>
    %449 = arith.mulf %447, %448 : vector<16x32xf32>
    %450 = arith.addf %446, %449 : vector<16x32xf32>
    %451 = arith.extf %442 : vector<16x32xbf16> to vector<16x32xf32>
    %452 = math.tanh %450 : vector<16x32xf32>
    %453 = arith.mulf %451, %452 : vector<16x32xf32>
    %454 = arith.truncf %453 : vector<16x32xf32> to vector<16x32xbf16>
    %c6_i32_110 = arith.constant 6 : i32
    %455 = arith.index_cast %c6_i32_110 : i32 to index
    %c0_111 = arith.constant 0 : index
    %c0_112 = arith.constant 0 : index
    %456 = vector.load %arg9[%455, %c0_111, %c0_112] : memref<8x16x128xbf16, #tpu.memory_space<vmem>>, vector<1x16x128xbf16>
    %457 = vector.shape_cast %456 : vector<1x16x128xbf16> to vector<16x128xbf16>
    %cst_113 = arith.constant dense<0.000000e+00> : vector<16x128xf32>
    %458 = tpu.matmul %454, %284, %cst_113 {dimension_numbers = #tpu.dot_dimension_numbers<[1], [0], [0], [1], [0, 0, 1, 1], [], []>} : vector<16x32xbf16>, vector<32x128xbf16>, vector<16x128xf32> -> vector<16x128xf32>
    %459 = arith.extf %457 : vector<16x128xbf16> to vector<16x128xf32>
    %460 = arith.addf %459, %458 : vector<16x128xf32>
    %461 = arith.truncf %460 : vector<16x128xf32> to vector<16x128xbf16>
    %462 = vector.extract_strided_slice %461 {offsets = [0, 0], sizes = [16, 96], strides = [1, 1]} : vector<16x128xbf16> to vector<16x96xbf16>
    %463 = arith.negf %462 : vector<16x96xbf16>
    %464 = math.exp %463 : vector<16x96xbf16>
    %cst_114 = arith.constant 1.000000e+00 : bf16
    %465 = vector.broadcast %cst_114 : bf16 to vector<16x96xbf16>
    %466 = arith.addf %465, %464 : vector<16x96xbf16>
    %467 = arith.divf %465, %466 : vector<16x96xbf16>
    %468 = vector.extract_strided_slice %467 {offsets = [0, 0], sizes = [16, 32], strides = [1, 1]} : vector<16x96xbf16> to vector<16x32xbf16>
    %469 = vector.extract_strided_slice %467 {offsets = [0, 32], sizes = [16, 32], strides = [1, 1]} : vector<16x96xbf16> to vector<16x32xbf16>
    %470 = vector.extract_strided_slice %467 {offsets = [0, 64], sizes = [16, 32], strides = [1, 1]} : vector<16x96xbf16> to vector<16x32xbf16>
    %471 = vector.extract_strided_slice %461 {offsets = [0, 96], sizes = [16, 32], strides = [1, 1]} : vector<16x128xbf16> to vector<16x32xbf16>
    %472 = math.tanh %471 : vector<16x32xbf16>
    %473 = arith.extf %469 : vector<16x32xbf16> to vector<16x32xf32>
    %474 = arith.mulf %473, %450 : vector<16x32xf32>
    %475 = arith.extf %468 : vector<16x32xbf16> to vector<16x32xf32>
    %476 = arith.extf %472 : vector<16x32xbf16> to vector<16x32xf32>
    %477 = arith.mulf %475, %476 : vector<16x32xf32>
    %478 = arith.addf %474, %477 : vector<16x32xf32>
    %479 = arith.extf %470 : vector<16x32xbf16> to vector<16x32xf32>
    %480 = math.tanh %478 : vector<16x32xf32>
    %481 = arith.mulf %479, %480 : vector<16x32xf32>
    %482 = arith.truncf %481 : vector<16x32xf32> to vector<16x32xbf16>
    %c7_i32_115 = arith.constant 7 : i32
    %483 = arith.index_cast %c7_i32_115 : i32 to index
    %c0_116 = arith.constant 0 : index
    %c0_117 = arith.constant 0 : index
    %484 = vector.load %arg9[%483, %c0_116, %c0_117] : memref<8x16x128xbf16, #tpu.memory_space<vmem>>, vector<1x16x128xbf16>
    %485 = vector.shape_cast %484 : vector<1x16x128xbf16> to vector<16x128xbf16>
    %cst_118 = arith.constant dense<0.000000e+00> : vector<16x128xf32>
    %486 = tpu.matmul %482, %284, %cst_118 {dimension_numbers = #tpu.dot_dimension_numbers<[1], [0], [0], [1], [0, 0, 1, 1], [], []>} : vector<16x32xbf16>, vector<32x128xbf16>, vector<16x128xf32> -> vector<16x128xf32>
    %487 = arith.extf %485 : vector<16x128xbf16> to vector<16x128xf32>
    %488 = arith.addf %487, %486 : vector<16x128xf32>
    %489 = arith.truncf %488 : vector<16x128xf32> to vector<16x128xbf16>
    %490 = vector.extract_strided_slice %489 {offsets = [0, 0], sizes = [16, 96], strides = [1, 1]} : vector<16x128xbf16> to vector<16x96xbf16>
    %491 = arith.negf %490 : vector<16x96xbf16>
    %492 = math.exp %491 : vector<16x96xbf16>
    %cst_119 = arith.constant 1.000000e+00 : bf16
    %493 = vector.broadcast %cst_119 : bf16 to vector<16x96xbf16>
    %494 = arith.addf %493, %492 : vector<16x96xbf16>
    %495 = arith.divf %493, %494 : vector<16x96xbf16>
    %496 = vector.extract_strided_slice %495 {offsets = [0, 0], sizes = [16, 32], strides = [1, 1]} : vector<16x96xbf16> to vector<16x32xbf16>
    %497 = vector.extract_strided_slice %495 {offsets = [0, 32], sizes = [16, 32], strides = [1, 1]} : vector<16x96xbf16> to vector<16x32xbf16>
    %498 = vector.extract_strided_slice %495 {offsets = [0, 64], sizes = [16, 32], strides = [1, 1]} : vector<16x96xbf16> to vector<16x32xbf16>
    %499 = vector.extract_strided_slice %489 {offsets = [0, 96], sizes = [16, 32], strides = [1, 1]} : vector<16x128xbf16> to vector<16x32xbf16>
    %500 = math.tanh %499 : vector<16x32xbf16>
    %501 = arith.extf %497 : vector<16x32xbf16> to vector<16x32xf32>
    %502 = arith.mulf %501, %478 : vector<16x32xf32>
    %503 = arith.extf %496 : vector<16x32xbf16> to vector<16x32xf32>
    %504 = arith.extf %500 : vector<16x32xbf16> to vector<16x32xf32>
    %505 = arith.mulf %503, %504 : vector<16x32xf32>
    %506 = arith.addf %502, %505 : vector<16x32xf32>
    %507 = arith.extf %498 : vector<16x32xbf16> to vector<16x32xf32>
    %508 = math.tanh %506 : vector<16x32xf32>
    %509 = arith.mulf %507, %508 : vector<16x32xf32>
    %510 = arith.truncf %509 : vector<16x32xf32> to vector<16x32xbf16>
    %c8_i32_120 = arith.constant 8 : i32
    %c0_121 = arith.constant 0 : index
    %c0_122 = arith.constant 0 : index
    %511 = vector.load %arg6[%c0_121, %c0_122] : memref<32x128xbf16, #tpu.memory_space<vmem>>, vector<32x128xbf16>
    %cst_123 = arith.constant dense<0.000000e+00> : vector<16x128xf32>
    %512 = tpu.matmul %510, %511, %cst_123 {dimension_numbers = #tpu.dot_dimension_numbers<[1], [0], [0], [1], [0, 0, 1, 1], [], []>} : vector<16x32xbf16>, vector<32x128xbf16>, vector<16x128xf32> -> vector<16x128xf32>
    %c0_124 = arith.constant 0 : index
    %c0_125 = arith.constant 0 : index
    %513 = vector.load %arg7[%c0_124, %c0_125] : memref<1x128xf32, #tpu.memory_space<vmem>>, vector<1x128xf32>
    %514 = vector.broadcast %513 : vector<1x128xf32> to vector<16x128xf32>
    %515 = arith.addf %512, %514 : vector<16x128xf32>
    %c0_126 = arith.constant 0 : index
    %c0_127 = arith.constant 0 : index
    %516 = vector.load %arg8[%c0_126, %c0_127] : memref<16x128xf32, #tpu.memory_space<vmem>>, vector<16x128xf32>
    tpu.vector_store %arg8[%c0_126, %c0_127], %515 {strides = array<i32>} : memref<16x128xf32, #tpu.memory_space<vmem>>, vector<16x128xf32>,
    return
  }
  func.func @transform_0(%arg0: i32) -> (i32, i32, i32) {
    %c0_i32 = arith.constant 0 : i32
    %c0_i32_0 = arith.constant 0 : i32
    %c0_i32_1 = arith.constant 0 : i32
    return %c0_i32, %arg0, %c0_i32_0 : i32, i32, i32
  }
  func.func @transform_1(%arg0: i32) -> (i32, i32) {
    %c0_i32 = arith.constant 0 : i32
    %c0_i32_0 = arith.constant 0 : i32
    %c0_i32_1 = arith.constant 0 : i32
    return %c0_i32, %c0_i32_0 : i32, i32
  }
  func.func @transform_2(%arg0: i32) -> (i32, i32, i32) {
    %c0_i32 = arith.constant 0 : i32
    %c0_i32_0 = arith.constant 0 : i32
    %c0_i32_1 = arith.constant 0 : i32
    %c0_i32_2 = arith.constant 0 : i32
    return %c0_i32, %c0_i32_0, %c0_i32_1 : i32, i32, i32
  }
  func.func @transform_3(%arg0: i32) -> (i32, i32, i32) {
    %c0_i32 = arith.constant 0 : i32
    %c0_i32_0 = arith.constant 0 : i32
    %c0_i32_1 = arith.constant 0 : i32
    %c0_i32_2 = arith.constant 0 : i32
    return %c0_i32, %c0_i32_0, %c0_i32_1 : i32, i32, i32
  }
  func.func @transform_4(%arg0: i32) -> (i32, i32, i32) {
    %c0_i32 = arith.constant 0 : i32
    %c0_i32_0 = arith.constant 0 : i32
    %c0_i32_1 = arith.constant 0 : i32
    %c0_i32_2 = arith.constant 0 : i32
    return %c0_i32, %c0_i32_0, %c0_i32_1 : i32, i32, i32
  }
  func.func @transform_5(%arg0: i32) -> (i32, i32) {
    %c0_i32 = arith.constant 0 : i32
    %c0_i32_0 = arith.constant 0 : i32
    %c0_i32_1 = arith.constant 0 : i32
    return %c0_i32, %c0_i32_0 : i32, i32
  }
  func.func @transform_6(%arg0: i32) -> (i32, i32) {
    %c0_i32 = arith.constant 0 : i32
    %c0_i32_0 = arith.constant 0 : i32
    %c0_i32_1 = arith.constant 0 : i32
    return %c0_i32, %c0_i32_0 : i32, i32
  }
  func.func @transform_7(%arg0: i32) -> (i32, i32) {
    %c0_i32 = arith.constant 0 : i32
    %c0_i32_0 = arith.constant 0 : i32
    return %arg0, %c0_i32 : i32, i32
  }
}

</mosaic_0001>

<llo_original>
// kernel: lstm_fc_forward.1
$region0: #{lstm_fc_forward.1}
  #allocation0 [shape = 'u32[]', space=smem, size = 0x4, offset = 0x4, fixed_abs, tag = 'smem constant byte address 0x4 - core index']
  #allocation1 [shape = 'u32[72,128]{1,0:T(1,128)}', space=vmem, size = 0x9000, scoped, tag = 'internal scratch']
  #allocation2 [shape = 'bf16[8,16,128]{2,1,0:T(8,128)(2,1)}', space=vmem, size = 0x8000, scoped, tag = 'scratch operand']
  #allocation3 [shape = 'bf16[8,16,32]{2,1,0:T(8,128)(2,1)}', space=vmem, size = 0x8000, scoped, tag = 'scratch operand']
  %s0 = inlined_call_operand.vmem [shape: bf16[8,16,128], index: 0, kind: input, shape index: {}]
  %s1 = inlined_call_operand.vmem [shape: bf16[128,128], index: 1, kind: input, shape index: {}]
  %s2 = inlined_call_operand.hbm [shape: bf16[1,32,128], index: 2, kind: input, shape index: {}]
  %s3 = inlined_call_operand.vmem [shape: bf16[2,32,128], index: 3, kind: input, shape index: {}]
  %s4 = inlined_call_operand.vmem [shape: f32[2,1,128], index: 4, kind: input, shape index: {}]
  %s5 = inlined_call_operand.hbm [shape: bf16[32,128], index: 5, kind: input, shape index: {}]
  %s6 = inlined_call_operand.vmem [shape: f32[1,128], index: 6, kind: input, shape index: {}]
  %s7 = inlined_call_operand.vmem [shape: f32[16,128], index: 7, kind: output, shape index: {}]
  %s8 = sld [smem:[#allocation0]]
  $region46: #{lstm_fc_forward.1} parent=0
    _
  %s10 = ssub.s32 1, %s8
  %s11 = scalar_select 0, %s10, %s8
  $region1: #{lstm_fc_forward.1} parent=0
    #allocation4 [shape = 'u8[8192]{0}', space=vmem, size = 0x2000, scoped, tag = 'input window, operand 2, single buffered']
    #allocation5 [shape = 's32[1]{0}', space=sflag, size = 0x4, scoped, tag = 'scoped memory for lstm_fc_forward.1']
    #allocation6 [shape = 'u8[8192]{0}', space=vmem, size = 0x2000, scoped, tag = 'input window, operand 5, single buffered']
    #allocation7 [shape = 's32[1]{0}', space=sflag, size = 0x4, scoped, tag = 'scoped memory for lstm_fc_forward.1']
    %12 = vsyncpa [#allocation5], 0
    %13 = vsyncpa [#allocation7], 0
    // Predicated region
    $region2: #{lstm_fc_forward.1} parent=1 // pred_check
      _
    $region3: #{lstm_fc_forward.1} parent=1 // pred_check_branch
      %15 = sbr.rel (0) target = $region5
    $region4: #{lstm_fc_forward.1} parent=1 // pred_region
      _
    $region5: #{lstm_fc_forward.1} parent=1 // pred_fallthru
      _
    // Predicated region
    $region6: #{lstm_fc_forward.1} parent=1 // pred_check
      _
    $region7: #{lstm_fc_forward.1} parent=1 // pred_check_branch
      %17 = sbr.rel (0) target = $region9
    $region8: #{lstm_fc_forward.1} parent=1 // pred_region
      _
    $region9: #{lstm_fc_forward.1} parent=1 // pred_fallthru
      _
    // Predicated region
    $region10: #{lstm_fc_forward.1} parent=1 // pred_check
      _
    $region11: #{lstm_fc_forward.1} parent=1 // pred_check_branch
      %19 = sbr.rel (0) target = $region13
    $region12: #{lstm_fc_forward.1} parent=1 // pred_region
      %21 = vsyncadd [#allocation5], 0
      %s22 = sshll.u32 %s2, 4
      %s23 = int_to_ptr.hbm [resolvable:$true] %s22
      %s24 = sshll.u32 [#allocation4], 4
      %s25 = int_to_ptr.vmem [resolvable:$true] %s24
      %30 = dma.hbm_to_vmem [thread:$0]  %s23, 256, %s25, [#allocation5], 64, 64, 4
    $region13: #{lstm_fc_forward.1} parent=1 // pred_fallthru
      _
    // Predicated region
    $region14: #{lstm_fc_forward.1} parent=1 // pred_check
      _
    $region15: #{lstm_fc_forward.1} parent=1 // pred_check_branch
      %32 = sbr.rel (0) target = $region17
    $region16: #{lstm_fc_forward.1} parent=1 // pred_region
      _
    $region17: #{lstm_fc_forward.1} parent=1 // pred_fallthru
      _
    // Predicated region
    $region18: #{lstm_fc_forward.1} parent=1 // pred_check
      _
    $region19: #{lstm_fc_forward.1} parent=1 // pred_check_branch
      %34 = sbr.rel (0) target = $region21
    $region20: #{lstm_fc_forward.1} parent=1 // pred_region
      _
    $region21: #{lstm_fc_forward.1} parent=1 // pred_fallthru
      _
    // Predicated region
    $region22: #{lstm_fc_forward.1} parent=1 // pred_check
      _
    $region23: #{lstm_fc_forward.1} parent=1 // pred_check_branch
      %36 = sbr.rel (0) target = $region25
    $region24: #{lstm_fc_forward.1} parent=1 // pred_region
      %38 = vsyncadd [#allocation7], 0
      %s39 = sshll.u32 %s5, 4
      %s40 = int_to_ptr.hbm [resolvable:$true] %s39
      %s41 = sshll.u32 [#allocation6], 4
      %s42 = int_to_ptr.vmem [resolvable:$true] %s41
      %47 = dma.hbm_to_vmem [thread:$0]  %s40, 256, %s42, [#allocation7], 64, 64, 4
    $region25: #{lstm_fc_forward.1} parent=1 // pred_fallthru
      _
    // Predicated region
    $region26: #{lstm_fc_forward.1} parent=1 // pred_check
      _
    $region27: #{lstm_fc_forward.1} parent=1 // pred_check_branch
      %49 = sbr.rel (0) target = $region29
    $region28: #{lstm_fc_forward.1} parent=1 // pred_region
      _
    $region29: #{lstm_fc_forward.1} parent=1 // pred_fallthru
      _
    // Predicated region
    $region30: #{lstm_fc_forward.1} parent=1 // pred_check
      _
    $region31: #{lstm_fc_forward.1} parent=1 // pred_check_branch
      %51 = sbr.rel (0) target = $region33
    $region32: #{lstm_fc_forward.1} parent=1 // pred_region
      %53 = dma.done [#allocation5], 256
    $region33: #{lstm_fc_forward.1} parent=1 // pred_fallthru
      _
    // Predicated region
    $region34: #{lstm_fc_forward.1} parent=1 // pred_check
      _
    $region35: #{lstm_fc_forward.1} parent=1 // pred_check_branch
      %55 = sbr.rel (0) target = $region37
    $region36: #{lstm_fc_forward.1} parent=1 // pred_region
      %57 = dma.done [#allocation7], 256
    $region37: #{lstm_fc_forward.1} parent=1 // pred_fallthru
      _
    %v60 = vld [vmem:[%s0] sm:$0xf]
    %v61 = vld [vmem:[%s0 + $0x4] sm:$0xf]
    %v62 = vld [vmem:[%s0 + $0x8] sm:$0xf]
    %v63 = vld [vmem:[%s0 + $0xc] sm:$0xf]
    %v64 = vld [vmem:[%s0 + $0x10] sm:$0xf]
    %v65 = vld [vmem:[%s0 + $0x14] sm:$0xf]
    %v66 = vld [vmem:[%s0 + $0x18] sm:$0xf]
    %v67 = vld [vmem:[%s0 + $0x1c] sm:$0xf]
    %v68 = vld [vmem:[%s0 + $0x20] sm:$0xf]
    %v69 = vld [vmem:[%s0 + $0x24] sm:$0xf]
    %v70 = vld [vmem:[%s0 + $0x28] sm:$0xf]
    %v71 = vld [vmem:[%s0 + $0x2c] sm:$0xf]
    %v72 = vld [vmem:[%s0 + $0x30] sm:$0xf]
    %v73 = vld [vmem:[%s0 + $0x34] sm:$0xf]
    %v74 = vld [vmem:[%s0 + $0x38] sm:$0xf]
    %v75 = vld [vmem:[%s0 + $0x3c] sm:$0xf]
    %v76 = vld [vmem:[%s1] sm:$0xf]
    %v77 = vld [vmem:[%s1 + $0x4] sm:$0xf]
    %v78 = vld [vmem:[%s1 + $0x8] sm:$0xf]
    %v79 = vld [vmem:[%s1 + $0xc] sm:$0xf]
    %v80 = vld [vmem:[%s1 + $0x10] sm:$0xf]
    %v81 = vld [vmem:[%s1 + $0x14] sm:$0xf]
    %v82 = vld [vmem:[%s1 + $0x18] sm:$0xf]
    %v83 = vld [vmem:[%s1 + $0x1c] sm:$0xf]
    %v84 = vld [vmem:[%s1 + $0x20] sm:$0xf]
    %v85 = vld [vmem:[%s1 + $0x24] sm:$0xf]
    %v86 = vld [vmem:[%s1 + $0x28] sm:$0xf]
    %v87 = vld [vmem:[%s1 + $0x2c] sm:$0xf]
    %v88 = vld [vmem:[%s1 + $0x30] sm:$0xf]
    %v89 = vld [vmem:[%s1 + $0x34] sm:$0xf]
    %v90 = vld [vmem:[%s1 + $0x38] sm:$0xf]
    %v91 = vld [vmem:[%s1 + $0x3c] sm:$0xf]
    %v92 = vld [vmem:[%s4] sm:$0x1]
    %v94 = vperm.slane %v92, 0
    %v112 = vunpack.c.l.b16 %v60
    %v113 = vunpack.c.l.b16 %v61
    %v114 = vunpack.c.l.b16 %v62
    %v115 = vunpack.c.l.b16 %v63
    %v116 = vunpack.c.l.b16 %v64
    %v117 = vunpack.c.l.b16 %v65
    %v118 = vunpack.c.l.b16 %v66
    %v119 = vunpack.c.l.b16 %v67
    %v120 = vunpack.c.l.b16 %v68
    %v121 = vunpack.c.l.b16 %v69
    %v122 = vunpack.c.l.b16 %v70
    %v123 = vunpack.c.l.b16 %v71
    %v124 = vunpack.c.l.b16 %v72
    %v125 = vunpack.c.l.b16 %v73
    %v126 = vunpack.c.l.b16 %v74
    %v127 = vunpack.c.l.b16 %v75
    %v128 = vpack.c.b16 %v113, %v112
    %v129 = vpack.c.b16 %v115, %v114
    %v130 = vpack.c.b16 %v117, %v116
    %v131 = vpack.c.b16 %v119, %v118
    %v132 = vpack.c.b16 %v121, %v120
    %v133 = vpack.c.b16 %v123, %v122
    %v134 = vpack.c.b16 %v125, %v124
    %v135 = vpack.c.b16 %v127, %v126
    %v160 = vunpack.c.l.b16 %v76
    %v161 = vunpack.c.l.b16 %v77
    %v162 = vunpack.c.l.b16 %v78
    %v163 = vunpack.c.l.b16 %v79
    %v164 = vunpack.c.l.b16 %v80
    %v165 = vunpack.c.l.b16 %v81
    %v166 = vunpack.c.l.b16 %v82
    %v167 = vunpack.c.l.b16 %v83
    %v168 = vunpack.c.l.b16 %v84
    %v169 = vunpack.c.l.b16 %v85
    %v170 = vunpack.c.l.b16 %v86
    %v171 = vunpack.c.l.b16 %v87
    %v172 = vunpack.c.l.b16 %v88
    %v173 = vunpack.c.l.b16 %v89
    %v174 = vunpack.c.l.b16 %v90
    %v175 = vunpack.c.l.b16 %v91
    %v176 = vpack.c.b16 %v161, %v160
    %v177 = vpack.c.b16 %v163, %v162
    %v178 = vpack.c.b16 %v165, %v164
    %v179 = vpack.c.b16 %v167, %v166
    %v180 = vpack.c.b16 %v169, %v168
    %v181 = vpack.c.b16 %v171, %v170
    %v182 = vpack.c.b16 %v173, %v172
    %v183 = vpack.c.b16 %v175, %v174
    %192 = vmatpush.bf16.msra.mxu0 %v183
    %193 = vmatpush.bf16.msra.mxu0 %v182
    %194 = vmatpush.bf16.msra.mxu0 %v181
    %195 = vmatpush.bf16.msra.mxu0 %v180
    %196 = vmatpush.bf16.msra.mxu0 %v179
    %197 = vmatpush.bf16.msra.mxu0 %v178
    %198 = vmatpush.bf16.msra.mxu0 %v177
    %199 = vmatpush.bf16.msra.mxu0 %v176
    %200 = vmatmul.bf16.gmra.mxu0 %v128
    %v201 = vpop.f32.mrf.mxu0
    %v202 = vadd.f32 %v94, %v201
    %v203 = vpop.f32.mrf.mxu0
    %v204 = vadd.f32 %v94, %v203
    %205 = vmatmul.bf16.gmra.mxu0 %v129
    %v206 = vpop.f32.mrf.mxu0
    %v207 = vadd.f32 %v94, %v206
    %v208 = vpop.f32.mrf.mxu0
    %v209 = vadd.f32 %v94, %v208
    %210 = vmatmul.bf16.gmra.mxu0 %v130
    %v211 = vpop.f32.mrf.mxu0
    %v212 = vadd.f32 %v94, %v211
    %v213 = vpop.f32.mrf.mxu0
    %v214 = vadd.f32 %v94, %v213
    %215 = vmatmul.bf16.gmra.mxu0 %v131
    %v216 = vpop.f32.mrf.mxu0
    %v217 = vadd.f32 %v94, %v216
    %v218 = vpop.f32.mrf.mxu0
    %v219 = vadd.f32 %v94, %v218
    %220 = vmatmul.bf16.gmra.mxu0 %v132
    %v221 = vpop.f32.mrf.mxu0
    %v222 = vadd.f32 %v94, %v221
    %v223 = vpop.f32.mrf.mxu0
    %v224 = vadd.f32 %v94, %v223
    %225 = vmatmul.bf16.gmra.mxu0 %v133
    %v226 = vpop.f32.mrf.mxu0
    %v227 = vadd.f32 %v94, %v226
    %v228 = vpop.f32.mrf.mxu0
    %v229 = vadd.f32 %v94, %v228
    %230 = vmatmul.bf16.gmra.mxu0 %v134
    %v231 = vpop.f32.mrf.mxu0
    %v232 = vadd.f32 %v94, %v231
    %v233 = vpop.f32.mrf.mxu0
    %v234 = vadd.f32 %v94, %v233
    %235 = vmatmul.bf16.gmra.mxu0 %v135
    %v236 = vpop.f32.mrf.mxu0
    %v237 = vadd.f32 %v94, %v236
    %v238 = vpop.f32.mrf.mxu0
    %v239 = vadd.f32 %v94, %v238
    %240 = vdwg.mxu0
    %v241 = vpack.c.bf16 %v202, %v202
    %v242 = vpack.c.bf16 %v204, %v204
    %v243 = vpack.c.bf16 %v207, %v207
    %v244 = vpack.c.bf16 %v209, %v209
    %v245 = vpack.c.bf16 %v212, %v212
    %v246 = vpack.c.bf16 %v214, %v214
    %v247 = vpack.c.bf16 %v217, %v217
    %v248 = vpack.c.bf16 %v219, %v219
    %v249 = vpack.c.bf16 %v222, %v222
    %v250 = vpack.c.bf16 %v224, %v224
    %v251 = vpack.c.bf16 %v227, %v227
    %v252 = vpack.c.bf16 %v229, %v229
    %v253 = vpack.c.bf16 %v232, %v232
    %v254 = vpack.c.bf16 %v234, %v234
    %v255 = vpack.c.bf16 %v237, %v237
    %v256 = vpack.c.bf16 %v239, %v239
    %257 = vst [vmem:[#allocation2] sm:$0xf] %v241
    %258 = vst [vmem:[#allocation2 + $0x4] sm:$0xf] %v242
    %259 = vst [vmem:[#allocation2 + $0x8] sm:$0xf] %v243
    %260 = vst [vmem:[#allocation2 + $0xc] sm:$0xf] %v244
    %261 = vst [vmem:[#allocation2 + $0x10] sm:$0xf] %v245
    %262 = vst [vmem:[#allocation2 + $0x14] sm:$0xf] %v246
    %263 = vst [vmem:[#allocation2 + $0x18] sm:$0xf] %v247
    %264 = vst [vmem:[#allocation2 + $0x1c] sm:$0xf] %v248
    %265 = vst [vmem:[#allocation2 + $0x20] sm:$0xf] %v249
    %266 = vst [vmem:[#allocation2 + $0x24] sm:$0xf] %v250
    %267 = vst [vmem:[#allocation2 + $0x28] sm:$0xf] %v251
    %268 = vst [vmem:[#allocation2 + $0x2c] sm:$0xf] %v252
    %269 = vst [vmem:[#allocation2 + $0x30] sm:$0xf] %v253
    %270 = vst [vmem:[#allocation2 + $0x34] sm:$0xf] %v254
    %271 = vst [vmem:[#allocation2 + $0x38] sm:$0xf] %v255
    %272 = vst [vmem:[#allocation2 + $0x3c] sm:$0xf] %v256
    %v273 = vld [vmem:[%s3] sm:$0xf]
    %v274 = vld [vmem:[%s3 + $0x4] sm:$0xf]
    %v275 = vld [vmem:[%s3 + $0x8] sm:$0xf]
    %v276 = vld [vmem:[%s3 + $0xc] sm:$0xf]
    %v277 = vld [vmem:[#allocation2] sm:$0xf]
    %v278 = vld [vmem:[#allocation2 + $0x4] sm:$0xf]
    %v283 = vunpack.c.l.b16 %v273
    %v284 = vunpack.c.l.b16 %v274
    %v285 = vunpack.c.l.b16 %v275
    %v286 = vunpack.c.l.b16 %v276
    %v287 = vpack.c.b16 %v284, %v283
    %v288 = vpack.c.b16 %v286, %v285
    %vm291 = vcmask 261120
    %v293 = vsel %vm291, 0, 0
    %295 = vmatpush.bf16.msra.mxu0 0
    %296 = vmatpush.bf16.msra.mxu0 0
    %297 = vmatpush.bf16.msra.mxu0 0
    %298 = vmatpush.bf16.msra.mxu0 0
    %299 = vmatpush.bf16.msra.mxu0 0
    %300 = vmatpush.bf16.msra.mxu0 0
    %301 = vmatpush.bf16.msra.mxu0 %v288
    %302 = vmatpush.bf16.msra.mxu0 %v287
    %303 = vmatmul.bf16.gmra.mxu0 %v293
    %v304 = vpop.f32.mrf.mxu0
    %v305 = vadd.f32 0.0, %v304
    %v306 = vpop.f32.mrf.mxu0
    %v307 = vadd.f32 0.0, %v306
    %308 = vdwg.mxu0
    %v309 = vunpack.c.l.bf16 %v277
    %v310 = vunpack.c.l.bf16 %v278
    %v311 = vadd.f32 %v309, %v305
    %v312 = vadd.f32 %v310, %v307
    %v313 = vpack.c.bf16 %v311, %v311
    %v314 = vpack.c.bf16 %v312, %v312
    %v315 = vxor.u32 %v313, 2147516416
    %v316 = vxor.u32 %v314, 2147516416
    %v317 = vunpack.c.l.bf16 %v315
    %v318 = vunpack.c.l.bf16 %v316
    %v319 = vmul.f32 %v317, 1.442695
    %v320 = vpow.pop %v319
    %v321 = vmul.f32 %v318, 1.442695
    %v322 = vpow.pop %v321
    %v323 = vpack.c.bf16 %v320, %v320
    %v324 = vpack.c.bf16 %v322, %v322
    %v325 = vunpack.c.l.bf16 %v323
    %v326 = vunpack.c.l.bf16 %v324
    %v327 = vadd.f32 %v325, 1.0
    %v328 = vadd.f32 %v326, 1.0
    %v329 = vpack.c.bf16 %v327, %v327
    %v330 = vpack.c.bf16 %v328, %v328
    %v331 = vunpack.c.h.bf16 1065369472
    %v332 = vunpack.c.l.bf16 1065369472
    %v333 = vunpack.c.h.bf16 %v329
    %v334 = vunpack.c.l.bf16 %v329
    %v335 = vrcp.pop %v333
    %v336 = vmul.f32 %v331, %v335
    %v337 = vrcp.pop %v334
    %v338 = vmul.f32 %v332, %v337
    %v339 = vpack.c.bf16 %v336, %v338
    %v340 = vunpack.c.h.bf16 %v330
    %v341 = vunpack.c.l.bf16 %v330
    %v342 = vrcp.pop %v340
    %v343 = vmul.f32 %v331, %v342
    %v344 = vrcp.pop %v341
    %v345 = vmul.f32 %v332, %v344
    %v346 = vpack.c.bf16 %v343, %v345
    %v347 = vunpack.c.l.bf16 %v313
    %v348 = vunpack.c.l.bf16 %v314
    %v349 = vtanh.pop %v347
    %v350 = vtanh.pop %v348
    %v351 = vpack.c.bf16 %v349, %v349
    %v352 = vpack.c.bf16 %v350, %v350
    %v353 = vunpack.c.l.bf16 %v339
    %v354 = vunpack.c.l.bf16 %v346
    %v355 = vmul.f32 %v353, 0.0
    %v356 = vmul.f32 %v354, 0.0
    %v357 = vunpack.c.l.bf16 %v351
    %v358 = vunpack.c.l.bf16 %v352
    %361 = vrot.lane.b32.xlu0 %v357, 32
    %v362 = vpop.permute.xlu0 %361
    %363 = vrot.lane.b32.xlu0 %v358, 32
    %v364 = vpop.permute.xlu0 %363
    %v367 = vmul.f32 %v353, %v362
    %v368 = vmul.f32 %v354, %v364
    %371 = vrot.lane.b32.xlu0 %v367, 32
    %v372 = vpop.permute.xlu0 %371
    %373 = vrot.lane.b32.xlu0 %v368, 32
    %v374 = vpop.permute.xlu0 %373
    %v377 = vadd.f32 %v355, %v372
    %v378 = vadd.f32 %v356, %v374
    %v379 = vtanh.pop %v377
    %v380 = vtanh.pop %v378
    %383 = vrot.lane.b32.xlu0 %v379, 32
    %v384 = vpop.permute.xlu0 %383
    %385 = vrot.lane.b32.xlu0 %v380, 32
    %v386 = vpop.permute.xlu0 %385
    %v389 = vmul.f32 %v353, %v384
    %v390 = vmul.f32 %v354, %v386
    %v391 = vpack.c.bf16 %v389, %v389
    %v392 = vpack.c.bf16 %v390, %v390
    %395 = vrot.lane.b32.xlu0 %v391, 64
    %v396 = vpop.permute.xlu0 %395
    %397 = vrot.lane.b32.xlu0 %v392, 64
    %v398 = vpop.permute.xlu0 %397
    %vm401 = vcmask 257024
    %402 = vst.msk [vmem:[#allocation3] sm:$0xf] %vm401, %v396
    %403 = vst.msk [vmem:[#allocation3 + $0x4] sm:$0xf] %vm401, %v398
    %s404 = scalar_lea.vmem [#allocation2], 8
    %v405 = vld [vmem:[%s404] sm:$0xf]
    %v406 = vld [vmem:[%s404 + $0x4] sm:$0xf]
    %v407 = vunpack.c.l.b16 %v391
    %v408 = vunpack.c.l.b16 %v392
    %v409 = vpack.c.b16 %v408, %v407
    %410 = vrot.lane.b32.xlu0 %v409, 64
    %v411 = vpop.permute.xlu0 %410
    %v413 = vsel %vm291, %v411, 0
    %415 = vmatpush.bf16.msra.mxu0 0
    %416 = vmatpush.bf16.msra.mxu0 0
    %417 = vmatpush.bf16.msra.mxu0 0
    %418 = vmatpush.bf16.msra.mxu0 0
    %419 = vmatpush.bf16.msra.mxu0 0
    %420 = vmatpush.bf16.msra.mxu0 0
    %421 = vmatpush.bf16.msra.mxu0 %v288
    %422 = vmatpush.bf16.msra.mxu0 %v287
    %423 = vmatmul.bf16.gmra.mxu0 %v413
    %v424 = vpop.f32.mrf.mxu0
    %v425 = vadd.f32 0.0, %v424
    %v426 = vpop.f32.mrf.mxu0
    %v427 = vadd.f32 0.0, %v426
    %428 = vdwg.mxu0
    %v429 = vunpack.c.l.bf16 %v405
    %v430 = vunpack.c.l.bf16 %v406
    %v431 = vadd.f32 %v429, %v425
    %v432 = vadd.f32 %v430, %v427
    %v433 = vpack.c.bf16 %v431, %v431
    %v434 = vpack.c.bf16 %v432, %v432
    %v435 = vxor.u32 %v433, 2147516416
    %v436 = vxor.u32 %v434, 2147516416
    %v437 = vunpack.c.l.bf16 %v435
    %v438 = vunpack.c.l.bf16 %v436
    %v439 = vmul.f32 %v437, 1.442695
    %v440 = vpow.pop %v439
    %v441 = vmul.f32 %v438, 1.442695
    %v442 = vpow.pop %v441
    %v443 = vpack.c.bf16 %v440, %v440
    %v444 = vpack.c.bf16 %v442, %v442
    %v445 = vunpack.c.l.bf16 %v443
    %v446 = vunpack.c.l.bf16 %v444
    %v447 = vadd.f32 %v445, 1.0
    %v448 = vadd.f32 %v446, 1.0
    %v449 = vpack.c.bf16 %v447, %v447
    %v450 = vpack.c.bf16 %v448, %v448
    %v451 = vunpack.c.h.bf16 %v449
    %v452 = vunpack.c.l.bf16 %v449
    %v453 = vrcp.pop %v451
    %v454 = vmul.f32 %v331, %v453
    %v455 = vrcp.pop %v452
    %v456 = vmul.f32 %v332, %v455
    %v457 = vpack.c.bf16 %v454, %v456
    %v458 = vunpack.c.h.bf16 %v450
    %v459 = vunpack.c.l.bf16 %v450
    %v460 = vrcp.pop %v458
    %v461 = vmul.f32 %v331, %v460
    %v462 = vrcp.pop %v459
    %v463 = vmul.f32 %v332, %v462
    %v464 = vpack.c.bf16 %v461, %v463
    %v465 = vunpack.c.l.bf16 %v433
    %v466 = vunpack.c.l.bf16 %v434
    %v467 = vtanh.pop %v465
    %v468 = vtanh.pop %v466
    %v469 = vpack.c.bf16 %v467, %v467
    %v470 = vpack.c.bf16 %v468, %v468
    %v471 = vunpack.c.l.bf16 %v457
    %v472 = vunpack.c.l.bf16 %v464
    %v473 = vmul.f32 %v471, %v377
    %v474 = vmul.f32 %v472, %v378
    %v475 = vunpack.c.l.bf16 %v469
    %v476 = vunpack.c.l.bf16 %v470
    %479 = vrot.lane.b32.xlu0 %v475, 32
    %v480 = vpop.permute.xlu0 %479
    %481 = vrot.lane.b32.xlu0 %v476, 32
    %v482 = vpop.permute.xlu0 %481
    %v485 = vmul.f32 %v471, %v480
    %v486 = vmul.f32 %v472, %v482
    %489 = vrot.lane.b32.xlu0 %v485, 32
    %v490 = vpop.permute.xlu0 %489
    %491 = vrot.lane.b32.xlu0 %v486, 32
    %v492 = vpop.permute.xlu0 %491
    %v495 = vadd.f32 %v473, %v490
    %v496 = vadd.f32 %v474, %v492
    %v497 = vtanh.pop %v495
    %v498 = vtanh.pop %v496
    %501 = vrot.lane.b32.xlu0 %v497, 32
    %v502 = vpop.permute.xlu0 %501
    %503 = vrot.lane.b32.xlu0 %v498, 32
    %v504 = vpop.permute.xlu0 %503
    %v507 = vmul.f32 %v471, %v502
    %v508 = vmul.f32 %v472, %v504
    %v509 = vpack.c.bf16 %v507, %v507
    %v510 = vpack.c.bf16 %v508, %v508
    %513 = vrot.lane.b32.xlu0 %v509, 64
    %v514 = vpop.permute.xlu0 %513
    %515 = vrot.lane.b32.xlu0 %v510, 64
    %v516 = vpop.permute.xlu0 %515
    %s519 = scalar_lea.vmem [#allocation3], 8
    %520 = vst.msk [vmem:[%s519] sm:$0xf] %vm401, %v514
    %521 = vst.msk [vmem:[%s519 + $0x4] sm:$0xf] %vm401, %v516
    %s522 = scalar_lea.vmem [#allocation2], 16
    %v523 = vld [vmem:[%s522] sm:$0xf]
    %v524 = vld [vmem:[%s522 + $0x4] sm:$0xf]
    %v525 = vunpack.c.l.b16 %v509
    %v526 = vunpack.c.l.b16 %v510
    %v527 = vpack.c.b16 %v526, %v525
    %528 = vrot.lane.b32.xlu0 %v527, 64
    %v529 = vpop.permute.xlu0 %528
    %v531 = vsel %vm291, %v529, 0
    %533 = vmatpush.bf16.msra.mxu0 0
    %534 = vmatpush.bf16.msra.mxu0 0
    %535 = vmatpush.bf16.msra.mxu0 0
    %536 = vmatpush.bf16.msra.mxu0 0
    %537 = vmatpush.bf16.msra.mxu0 0
    %538 = vmatpush.bf16.msra.mxu0 0
    %539 = vmatpush.bf16.msra.mxu0 %v288
    %540 = vmatpush.bf16.msra.mxu0 %v287
    %541 = vmatmul.bf16.gmra.mxu0 %v531
    %v542 = vpop.f32.mrf.mxu0
    %v543 = vadd.f32 0.0, %v542
    %v544 = vpop.f32.mrf.mxu0
    %v545 = vadd.f32 0.0, %v544
    %546 = vdwg.mxu0
    %v547 = vunpack.c.l.bf16 %v523
    %v548 = vunpack.c.l.bf16 %v524
    %v549 = vadd.f32 %v547, %v543
    %v550 = vadd.f32 %v548, %v545
    %v551 = vpack.c.bf16 %v549, %v549
    %v552 = vpack.c.bf16 %v550, %v550
    %v553 = vxor.u32 %v551, 2147516416
    %v554 = vxor.u32 %v552, 2147516416
    %v555 = vunpack.c.l.bf16 %v553
    %v556 = vunpack.c.l.bf16 %v554
    %v557 = vmul.f32 %v555, 1.442695
    %v558 = vpow.pop %v557
    %v559 = vmul.f32 %v556, 1.442695
    %v560 = vpow.pop %v559
    %v561 = vpack.c.bf16 %v558, %v558
    %v562 = vpack.c.bf16 %v560, %v560
    %v563 = vunpack.c.l.bf16 %v561
    %v564 = vunpack.c.l.bf16 %v562
    %v565 = vadd.f32 %v563, 1.0
    %v566 = vadd.f32 %v564, 1.0
    %v567 = vpack.c.bf16 %v565, %v565
    %v568 = vpack.c.bf16 %v566, %v566
    %v569 = vunpack.c.h.bf16 %v567
    %v570 = vunpack.c.l.bf16 %v567
    %v571 = vrcp.pop %v569
    %v572 = vmul.f32 %v331, %v571
    %v573 = vrcp.pop %v570
    %v574 = vmul.f32 %v332, %v573
    %v575 = vpack.c.bf16 %v572, %v574
    %v576 = vunpack.c.h.bf16 %v568
    %v577 = vunpack.c.l.bf16 %v568
    %v578 = vrcp.pop %v576
    %v579 = vmul.f32 %v331, %v578
    %v580 = vrcp.pop %v577
    %v581 = vmul.f32 %v332, %v580
    %v582 = vpack.c.bf16 %v579, %v581
    %v583 = vunpack.c.l.bf16 %v551
    %v584 = vunpack.c.l.bf16 %v552
    %v585 = vtanh.pop %v583
    %v586 = vtanh.pop %v584
    %v587 = vpack.c.bf16 %v585, %v585
    %v588 = vpack.c.bf16 %v586, %v586
    %v589 = vunpack.c.l.bf16 %v575
    %v590 = vunpack.c.l.bf16 %v582
    %v591 = vmul.f32 %v589, %v495
    %v592 = vmul.f32 %v590, %v496
    %v593 = vunpack.c.l.bf16 %v587
    %v594 = vunpack.c.l.bf16 %v588
    %597 = vrot.lane.b32.xlu0 %v593, 32
    %v598 = vpop.permute.xlu0 %597
    %599 = vrot.lane.b32.xlu0 %v594, 32
    %v600 = vpop.permute.xlu0 %599
    %v603 = vmul.f32 %v589, %v598
    %v604 = vmul.f32 %v590, %v600
    %607 = vrot.lane.b32.xlu0 %v603, 32
    %v608 = vpop.permute.xlu0 %607
    %609 = vrot.lane.b32.xlu0 %v604, 32
    %v610 = vpop.permute.xlu0 %609
    %v613 = vadd.f32 %v591, %v608
    %v614 = vadd.f32 %v592, %v610
    %v615 = vtanh.pop %v613
    %v616 = vtanh.pop %v614
    %619 = vrot.lane.b32.xlu0 %v615, 32
    %v620 = vpop.permute.xlu0 %619
    %621 = vrot.lane.b32.xlu0 %v616, 32
    %v622 = vpop.permute.xlu0 %621
    %v625 = vmul.f32 %v589, %v620
    %v626 = vmul.f32 %v590, %v622
    %v627 = vpack.c.bf16 %v625, %v625
    %v628 = vpack.c.bf16 %v626, %v626
    %631 = vrot.lane.b32.xlu0 %v627, 64
    %v632 = vpop.permute.xlu0 %631
    %633 = vrot.lane.b32.xlu0 %v628, 64
    %v634 = vpop.permute.xlu0 %633
    %s637 = scalar_lea.vmem [#allocation3], 16
    %638 = vst.msk [vmem:[%s637] sm:$0xf] %vm401, %v632
    %639 = vst.msk [vmem:[%s637 + $0x4] sm:$0xf] %vm401, %v634
    %s640 = scalar_lea.vmem [#allocation2], 24
    %v641 = vld [vmem:[%s640] sm:$0xf]
    %v642 = vld [vmem:[%s640 + $0x4] sm:$0xf]
    %v643 = vunpack.c.l.b16 %v627
    %v644 = vunpack.c.l.b16 %v628
    %v645 = vpack.c.b16 %v644, %v643
    %646 = vrot.lane.b32.xlu0 %v645, 64
    %v647 = vpop.permute.xlu0 %646
    %v649 = vsel %vm291, %v647, 0
    %651 = vmatpush.bf16.msra.mxu0 0
    %652 = vmatpush.bf16.msra.mxu0 0
    %653 = vmatpush.bf16.msra.mxu0 0
    %654 = vmatpush.bf16.msra.mxu0 0
    %655 = vmatpush.bf16.msra.mxu0 0
    %656 = vmatpush.bf16.msra.mxu0 0
    %657 = vmatpush.bf16.msra.mxu0 %v288
    %658 = vmatpush.bf16.msra.mxu0 %v287
    %659 = vmatmul.bf16.gmra.mxu0 %v649
    %v660 = vpop.f32.mrf.mxu0
    %v661 = vadd.f32 0.0, %v660
    %v662 = vpop.f32.mrf.mxu0
    %v663 = vadd.f32 0.0, %v662
    %664 = vdwg.mxu0
    %v665 = vunpack.c.l.bf16 %v641
    %v666 = vunpack.c.l.bf16 %v642
    %v667 = vadd.f32 %v665, %v661
    %v668 = vadd.f32 %v666, %v663
    %v669 = vpack.c.bf16 %v667, %v667
    %v670 = vpack.c.bf16 %v668, %v668
    %v671 = vxor.u32 %v669, 2147516416
    %v672 = vxor.u32 %v670, 2147516416
    %v673 = vunpack.c.l.bf16 %v671
    %v674 = vunpack.c.l.bf16 %v672
    %v675 = vmul.f32 %v673, 1.442695
    %v676 = vpow.pop %v675
    %v677 = vmul.f32 %v674, 1.442695
    %v678 = vpow.pop %v677
    %v679 = vpack.c.bf16 %v676, %v676
    %v680 = vpack.c.bf16 %v678, %v678
    %v681 = vunpack.c.l.bf16 %v679
    %v682 = vunpack.c.l.bf16 %v680
    %v683 = vadd.f32 %v681, 1.0
    %v684 = vadd.f32 %v682, 1.0
    %v685 = vpack.c.bf16 %v683, %v683
    %v686 = vpack.c.bf16 %v684, %v684
    %v687 = vunpack.c.h.bf16 %v685
    %v688 = vunpack.c.l.bf16 %v685
    %v689 = vrcp.pop %v687
    %v690 = vmul.f32 %v331, %v689
    %v691 = vrcp.pop %v688
    %v692 = vmul.f32 %v332, %v691
    %v693 = vpack.c.bf16 %v690, %v692
    %v694 = vunpack.c.h.bf16 %v686
    %v695 = vunpack.c.l.bf16 %v686
    %v696 = vrcp.pop %v694
    %v697 = vmul.f32 %v331, %v696
    %v698 = vrcp.pop %v695
    %v699 = vmul.f32 %v332, %v698
    %v700 = vpack.c.bf16 %v697, %v699
    %v701 = vunpack.c.l.bf16 %v669
    %v702 = vunpack.c.l.bf16 %v670
    %v703 = vtanh.pop %v701
    %v704 = vtanh.pop %v702
    %v705 = vpack.c.bf16 %v703, %v703
    %v706 = vpack.c.bf16 %v704, %v704
    %v707 = vunpack.c.l.bf16 %v693
    %v708 = vunpack.c.l.bf16 %v700
    %v709 = vmul.f32 %v707, %v613
    %v710 = vmul.f32 %v708, %v614
    %v711 = vunpack.c.l.bf16 %v705
    %v712 = vunpack.c.l.bf16 %v706
    %715 = vrot.lane.b32.xlu0 %v711, 32
    %v716 = vpop.permute.xlu0 %715
    %717 = vrot.lane.b32.xlu0 %v712, 32
    %v718 = vpop.permute.xlu0 %717
    %v721 = vmul.f32 %v707, %v716
    %v722 = vmul.f32 %v708, %v718
    %725 = vrot.lane.b32.xlu0 %v721, 32
    %v726 = vpop.permute.xlu0 %725
    %727 = vrot.lane.b32.xlu0 %v722, 32
    %v728 = vpop.permute.xlu0 %727
    %v731 = vadd.f32 %v709, %v726
    %v732 = vadd.f32 %v710, %v728
    %v733 = vtanh.pop %v731
    %v734 = vtanh.pop %v732
    %737 = vrot.lane.b32.xlu0 %v733, 32
    %v738 = vpop.permute.xlu0 %737
    %739 = vrot.lane.b32.xlu0 %v734, 32
    %v740 = vpop.permute.xlu0 %739
    %v743 = vmul.f32 %v707, %v738
    %v744 = vmul.f32 %v708, %v740
    %v745 = vpack.c.bf16 %v743, %v743
    %v746 = vpack.c.bf16 %v744, %v744
    %749 = vrot.lane.b32.xlu0 %v745, 64
    %v750 = vpop.permute.xlu0 %749
    %751 = vrot.lane.b32.xlu0 %v746, 64
    %v752 = vpop.permute.xlu0 %751
    %s755 = scalar_lea.vmem [#allocation3], 24
    %756 = vst.msk [vmem:[%s755] sm:$0xf] %vm401, %v750
    %757 = vst.msk [vmem:[%s755 + $0x4] sm:$0xf] %vm401, %v752
    %s758 = scalar_lea.vmem [#allocation2], 32
    %v759 = vld [vmem:[%s758] sm:$0xf]
    %v760 = vld [vmem:[%s758 + $0x4] sm:$0xf]
    %v761 = vunpack.c.l.b16 %v745
    %v762 = vunpack.c.l.b16 %v746
    %v763 = vpack.c.b16 %v762, %v761
    %764 = vrot.lane.b32.xlu0 %v763, 64
    %v765 = vpop.permute.xlu0 %764
    %v767 = vsel %vm291, %v765, 0
    %769 = vmatpush.bf16.msra.mxu0 0
    %770 = vmatpush.bf16.msra.mxu0 0
    %771 = vmatpush.bf16.msra.mxu0 0
    %772 = vmatpush.bf16.msra.mxu0 0
    %773 = vmatpush.bf16.msra.mxu0 0
    %774 = vmatpush.bf16.msra.mxu0 0
    %775 = vmatpush.bf16.msra.mxu0 %v288
    %776 = vmatpush.bf16.msra.mxu0 %v287
    %777 = vmatmul.bf16.gmra.mxu0 %v767
    %v778 = vpop.f32.mrf.mxu0
    %v779 = vadd.f32 0.0, %v778
    %v780 = vpop.f32.mrf.mxu0
    %v781 = vadd.f32 0.0, %v780
    %782 = vdwg.mxu0
    %v783 = vunpack.c.l.bf16 %v759
    %v784 = vunpack.c.l.bf16 %v760
    %v785 = vadd.f32 %v783, %v779
    %v786 = vadd.f32 %v784, %v781
    %v787 = vpack.c.bf16 %v785, %v785
    %v788 = vpack.c.bf16 %v786, %v786
    %v789 = vxor.u32 %v787, 2147516416
    %v790 = vxor.u32 %v788, 2147516416
    %v791 = vunpack.c.l.bf16 %v789
    %v792 = vunpack.c.l.bf16 %v790
    %v793 = vmul.f32 %v791, 1.442695
    %v794 = vpow.pop %v793
    %v795 = vmul.f32 %v792, 1.442695
    %v796 = vpow.pop %v795
    %v797 = vpack.c.bf16 %v794, %v794
    %v798 = vpack.c.bf16 %v796, %v796
    %v799 = vunpack.c.l.bf16 %v797
    %v800 = vunpack.c.l.bf16 %v798
    %v801 = vadd.f32 %v799, 1.0
    %v802 = vadd.f32 %v800, 1.0
    %v803 = vpack.c.bf16 %v801, %v801
    %v804 = vpack.c.bf16 %v802, %v802
    %v805 = vunpack.c.h.bf16 %v803
    %v806 = vunpack.c.l.bf16 %v803
    %v807 = vrcp.pop %v805
    %v808 = vmul.f32 %v331, %v807
    %v809 = vrcp.pop %v806
    %v810 = vmul.f32 %v332, %v809
    %v811 = vpack.c.bf16 %v808, %v810
    %v812 = vunpack.c.h.bf16 %v804
    %v813 = vunpack.c.l.bf16 %v804
    %v814 = vrcp.pop %v812
    %v815 = vmul.f32 %v331, %v814
    %v816 = vrcp.pop %v813
    %v817 = vmul.f32 %v332, %v816
    %v818 = vpack.c.bf16 %v815, %v817
    %v819 = vunpack.c.l.bf16 %v787
    %v820 = vunpack.c.l.bf16 %v788
    %v821 = vtanh.pop %v819
    %v822 = vtanh.pop %v820
    %v823 = vpack.c.bf16 %v821, %v821
    %v824 = vpack.c.bf16 %v822, %v822
    %v825 = vunpack.c.l.bf16 %v811
    %v826 = vunpack.c.l.bf16 %v818
    %v827 = vmul.f32 %v825, %v731
    %v828 = vmul.f32 %v826, %v732
    %v829 = vunpack.c.l.bf16 %v823
    %v830 = vunpack.c.l.bf16 %v824
    %833 = vrot.lane.b32.xlu0 %v829, 32
    %v834 = vpop.permute.xlu0 %833
    %835 = vrot.lane.b32.xlu0 %v830, 32
    %v836 = vpop.permute.xlu0 %835
    %v839 = vmul.f32 %v825, %v834
    %v840 = vmul.f32 %v826, %v836
    %843 = vrot.lane.b32.xlu0 %v839, 32
    %v844 = vpop.permute.xlu0 %843
    %845 = vrot.lane.b32.xlu0 %v840, 32
    %v846 = vpop.permute.xlu0 %845
    %v849 = vadd.f32 %v827, %v844
    %v850 = vadd.f32 %v828, %v846
    %v851 = vtanh.pop %v849
    %v852 = vtanh.pop %v850
    %855 = vrot.lane.b32.xlu0 %v851, 32
    %v856 = vpop.permute.xlu0 %855
    %857 = vrot.lane.b32.xlu0 %v852, 32
    %v858 = vpop.permute.xlu0 %857
    %v861 = vmul.f32 %v825, %v856
    %v862 = vmul.f32 %v826, %v858
    %v863 = vpack.c.bf16 %v861, %v861
    %v864 = vpack.c.bf16 %v862, %v862
    %867 = vrot.lane.b32.xlu0 %v863, 64
    %v868 = vpop.permute.xlu0 %867
    %869 = vrot.lane.b32.xlu0 %v864, 64
    %v870 = vpop.permute.xlu0 %869
    %s873 = scalar_lea.vmem [#allocation3], 32
    %874 = vst.msk [vmem:[%s873] sm:$0xf] %vm401, %v868
    %875 = vst.msk [vmem:[%s873 + $0x4] sm:$0xf] %vm401, %v870
    %s876 = scalar_lea.vmem [#allocation2], 40
    %v877 = vld [vmem:[%s876] sm:$0xf]
    %v878 = vld [vmem:[%s876 + $0x4] sm:$0xf]
    %v879 = vunpack.c.l.b16 %v863
    %v880 = vunpack.c.l.b16 %v864
    %v881 = vpack.c.b16 %v880, %v879
    %882 = vrot.lane.b32.xlu0 %v881, 64
    %v883 = vpop.permute.xlu0 %882
    %v885 = vsel %vm291, %v883, 0
    %887 = vmatpush.bf16.msra.mxu0 0
    %888 = vmatpush.bf16.msra.mxu0 0
    %889 = vmatpush.bf16.msra.mxu0 0
    %890 = vmatpush.bf16.msra.mxu0 0
    %891 = vmatpush.bf16.msra.mxu0 0
    %892 = vmatpush.bf16.msra.mxu0 0
    %893 = vmatpush.bf16.msra.mxu0 %v288
    %894 = vmatpush.bf16.msra.mxu0 %v287
    %895 = vmatmul.bf16.gmra.mxu0 %v885
    %v896 = vpop.f32.mrf.mxu0
    %v897 = vadd.f32 0.0, %v896
    %v898 = vpop.f32.mrf.mxu0
    %v899 = vadd.f32 0.0, %v898
    %900 = vdwg.mxu0
    %v901 = vunpack.c.l.bf16 %v877
    %v902 = vunpack.c.l.bf16 %v878
    %v903 = vadd.f32 %v901, %v897
    %v904 = vadd.f32 %v902, %v899
    %v905 = vpack.c.bf16 %v903, %v903
    %v906 = vpack.c.bf16 %v904, %v904
    %v907 = vxor.u32 %v905, 2147516416
    %v908 = vxor.u32 %v906, 2147516416
    %v909 = vunpack.c.l.bf16 %v907
    %v910 = vunpack.c.l.bf16 %v908
    %v911 = vmul.f32 %v909, 1.442695
    %v912 = vpow.pop %v911
    %v913 = vmul.f32 %v910, 1.442695
    %v914 = vpow.pop %v913
    %v915 = vpack.c.bf16 %v912, %v912
    %v916 = vpack.c.bf16 %v914, %v914
    %v917 = vunpack.c.l.bf16 %v915
    %v918 = vunpack.c.l.bf16 %v916
    %v919 = vadd.f32 %v917, 1.0
    %v920 = vadd.f32 %v918, 1.0
    %v921 = vpack.c.bf16 %v919, %v919
    %v922 = vpack.c.bf16 %v920, %v920
    %v923 = vunpack.c.h.bf16 %v921
    %v924 = vunpack.c.l.bf16 %v921
    %v925 = vrcp.pop %v923
    %v926 = vmul.f32 %v331, %v925
    %v927 = vrcp.pop %v924
    %v928 = vmul.f32 %v332, %v927
    %v929 = vpack.c.bf16 %v926, %v928
    %v930 = vunpack.c.h.bf16 %v922
    %v931 = vunpack.c.l.bf16 %v922
    %v932 = vrcp.pop %v930
    %v933 = vmul.f32 %v331, %v932
    %v934 = vrcp.pop %v931
    %v935 = vmul.f32 %v332, %v934
    %v936 = vpack.c.bf16 %v933, %v935
    %v937 = vunpack.c.l.bf16 %v905
    %v938 = vunpack.c.l.bf16 %v906
    %v939 = vtanh.pop %v937
    %v940 = vtanh.pop %v938
    %v941 = vpack.c.bf16 %v939, %v939
    %v942 = vpack.c.bf16 %v940, %v940
    %v943 = vunpack.c.l.bf16 %v929
    %v944 = vunpack.c.l.bf16 %v936
    %v945 = vmul.f32 %v943, %v849
    %v946 = vmul.f32 %v944, %v850
    %v947 = vunpack.c.l.bf16 %v941
    %v948 = vunpack.c.l.bf16 %v942
    %951 = vrot.lane.b32.xlu0 %v947, 32
    %v952 = vpop.permute.xlu0 %951
    %953 = vrot.lane.b32.xlu0 %v948, 32
    %v954 = vpop.permute.xlu0 %953
    %v957 = vmul.f32 %v943, %v952
    %v958 = vmul.f32 %v944, %v954
    %961 = vrot.lane.b32.xlu0 %v957, 32
    %v962 = vpop.permute.xlu0 %961
    %963 = vrot.lane.b32.xlu0 %v958, 32
    %v964 = vpop.permute.xlu0 %963
    %v967 = vadd.f32 %v945, %v962
    %v968 = vadd.f32 %v946, %v964
    %v969 = vtanh.pop %v967
    %v970 = vtanh.pop %v968
    %973 = vrot.lane.b32.xlu0 %v969, 32
    %v974 = vpop.permute.xlu0 %973
    %975 = vrot.lane.b32.xlu0 %v970, 32
    %v976 = vpop.permute.xlu0 %975
    %v979 = vmul.f32 %v943, %v974
    %v980 = vmul.f32 %v944, %v976
    %v981 = vpack.c.bf16 %v979, %v979
    %v982 = vpack.c.bf16 %v980, %v980
    %985 = vrot.lane.b32.xlu0 %v981, 64
    %v986 = vpop.permute.xlu0 %985
    %987 = vrot.lane.b32.xlu0 %v982, 64
    %v988 = vpop.permute.xlu0 %987
    %s991 = scalar_lea.vmem [#allocation3], 40
    %992 = vst.msk [vmem:[%s991] sm:$0xf] %vm401, %v986
    %993 = vst.msk [vmem:[%s991 + $0x4] sm:$0xf] %vm401, %v988
    %s994 = scalar_lea.vmem [#allocation2], 48
    %v995 = vld [vmem:[%s994] sm:$0xf]
    %v996 = vld [vmem:[%s994 + $0x4] sm:$0xf]
    %v997 = vunpack.c.l.b16 %v981
    %v998 = vunpack.c.l.b16 %v982
    %v999 = vpack.c.b16 %v998, %v997
    %1000 = vrot.lane.b32.xlu0 %v999, 64
    %v1001 = vpop.permute.xlu0 %1000
    %v1003 = vsel %vm291, %v1001, 0
    %1005 = vmatpush.bf16.msra.mxu0 0
    %1006 = vmatpush.bf16.msra.mxu0 0
    %1007 = vmatpush.bf16.msra.mxu0 0
    %1008 = vmatpush.bf16.msra.mxu0 0
    %1009 = vmatpush.bf16.msra.mxu0 0
    %1010 = vmatpush.bf16.msra.mxu0 0
    %1011 = vmatpush.bf16.msra.mxu0 %v288
    %1012 = vmatpush.bf16.msra.mxu0 %v287
    %1013 = vmatmul.bf16.gmra.mxu0 %v1003
    %v1014 = vpop.f32.mrf.mxu0
    %v1015 = vadd.f32 0.0, %v1014
    %v1016 = vpop.f32.mrf.mxu0
    %v1017 = vadd.f32 0.0, %v1016
    %1018 = vdwg.mxu0
    %v1019 = vunpack.c.l.bf16 %v995
    %v1020 = vunpack.c.l.bf16 %v996
    %v1021 = vadd.f32 %v1019, %v1015
    %v1022 = vadd.f32 %v1020, %v1017
    %v1023 = vpack.c.bf16 %v1021, %v1021
    %v1024 = vpack.c.bf16 %v1022, %v1022
    %v1025 = vxor.u32 %v1023, 2147516416
    %v1026 = vxor.u32 %v1024, 2147516416
    %v1027 = vunpack.c.l.bf16 %v1025
    %v1028 = vunpack.c.l.bf16 %v1026
    %v1029 = vmul.f32 %v1027, 1.442695
    %v1030 = vpow.pop %v1029
    %v1031 = vmul.f32 %v1028, 1.442695
    %v1032 = vpow.pop %v1031
    %v1033 = vpack.c.bf16 %v1030, %v1030
    %v1034 = vpack.c.bf16 %v1032, %v1032
    %v1035 = vunpack.c.l.bf16 %v1033
    %v1036 = vunpack.c.l.bf16 %v1034
    %v1037 = vadd.f32 %v1035, 1.0
    %v1038 = vadd.f32 %v1036, 1.0
    %v1039 = vpack.c.bf16 %v1037, %v1037
    %v1040 = vpack.c.bf16 %v1038, %v1038
    %v1041 = vunpack.c.h.bf16 %v1039
    %v1042 = vunpack.c.l.bf16 %v1039
    %v1043 = vrcp.pop %v1041
    %v1044 = vmul.f32 %v331, %v1043
    %v1045 = vrcp.pop %v1042
    %v1046 = vmul.f32 %v332, %v1045
    %v1047 = vpack.c.bf16 %v1044, %v1046
    %v1048 = vunpack.c.h.bf16 %v1040
    %v1049 = vunpack.c.l.bf16 %v1040
    %v1050 = vrcp.pop %v1048
    %v1051 = vmul.f32 %v331, %v1050
    %v1052 = vrcp.pop %v1049
    %v1053 = vmul.f32 %v332, %v1052
    %v1054 = vpack.c.bf16 %v1051, %v1053
    %v1055 = vunpack.c.l.bf16 %v1023
    %v1056 = vunpack.c.l.bf16 %v1024
    %v1057 = vtanh.pop %v1055
    %v1058 = vtanh.pop %v1056
    %v1059 = vpack.c.bf16 %v1057, %v1057
    %v1060 = vpack.c.bf16 %v1058, %v1058
    %v1061 = vunpack.c.l.bf16 %v1047
    %v1062 = vunpack.c.l.bf16 %v1054
    %v1063 = vmul.f32 %v1061, %v967
    %v1064 = vmul.f32 %v1062, %v968
    %v1065 = vunpack.c.l.bf16 %v1059
    %v1066 = vunpack.c.l.bf16 %v1060
    %1069 = vrot.lane.b32.xlu0 %v1065, 32
    %v1070 = vpop.permute.xlu0 %1069
    %1071 = vrot.lane.b32.xlu0 %v1066, 32
    %v1072 = vpop.permute.xlu0 %1071
    %v1075 = vmul.f32 %v1061, %v1070
    %v1076 = vmul.f32 %v1062, %v1072
    %1079 = vrot.lane.b32.xlu0 %v1075, 32
    %v1080 = vpop.permute.xlu0 %1079
    %1081 = vrot.lane.b32.xlu0 %v1076, 32
    %v1082 = vpop.permute.xlu0 %1081
    %v1085 = vadd.f32 %v1063, %v1080
    %v1086 = vadd.f32 %v1064, %v1082
    %v1087 = vtanh.pop %v1085
    %v1088 = vtanh.pop %v1086
    %1091 = vrot.lane.b32.xlu0 %v1087, 32
    %v1092 = vpop.permute.xlu0 %1091
    %1093 = vrot.lane.b32.xlu0 %v1088, 32
    %v1094 = vpop.permute.xlu0 %1093
    %v1097 = vmul.f32 %v1061, %v1092
    %v1098 = vmul.f32 %v1062, %v1094
    %v1099 = vpack.c.bf16 %v1097, %v1097
    %v1100 = vpack.c.bf16 %v1098, %v1098
    %1103 = vrot.lane.b32.xlu0 %v1099, 64
    %v1104 = vpop.permute.xlu0 %1103
    %1105 = vrot.lane.b32.xlu0 %v1100, 64
    %v1106 = vpop.permute.xlu0 %1105
    %s1109 = scalar_lea.vmem [#allocation3], 48
    %1110 = vst.msk [vmem:[%s1109] sm:$0xf] %vm401, %v1104
    %1111 = vst.msk [vmem:[%s1109 + $0x4] sm:$0xf] %vm401, %v1106
    %s1112 = scalar_lea.vmem [#allocation2], 56
    %v1113 = vld [vmem:[%s1112] sm:$0xf]
    %v1114 = vld [vmem:[%s1112 + $0x4] sm:$0xf]
    %v1115 = vunpack.c.l.b16 %v1099
    %v1116 = vunpack.c.l.b16 %v1100
    %v1117 = vpack.c.b16 %v1116, %v1115
    %1118 = vrot.lane.b32.xlu0 %v1117, 64
    %v1119 = vpop.permute.xlu0 %1118
    %v1121 = vsel %vm291, %v1119, 0
    %1123 = vmatpush.bf16.msra.mxu0 0
    %1124 = vmatpush.bf16.msra.mxu0 0
    %1125 = vmatpush.bf16.msra.mxu0 0
    %1126 = vmatpush.bf16.msra.mxu0 0
    %1127 = vmatpush.bf16.msra.mxu0 0
    %1128 = vmatpush.bf16.msra.mxu0 0
    %1129 = vmatpush.bf16.msra.mxu0 %v288
    %1130 = vmatpush.bf16.msra.mxu0 %v287
    %1131 = vmatmul.bf16.gmra.mxu0 %v1121
    %v1132 = vpop.f32.mrf.mxu0
    %v1133 = vadd.f32 0.0, %v1132
    %v1134 = vpop.f32.mrf.mxu0
    %v1135 = vadd.f32 0.0, %v1134
    %1136 = vdwg.mxu0
    %v1137 = vunpack.c.l.bf16 %v1113
    %v1138 = vunpack.c.l.bf16 %v1114
    %v1139 = vadd.f32 %v1137, %v1133
    %v1140 = vadd.f32 %v1138, %v1135
    %v1141 = vpack.c.bf16 %v1139, %v1139
    %v1142 = vpack.c.bf16 %v1140, %v1140
    %v1143 = vxor.u32 %v1141, 2147516416
    %v1144 = vxor.u32 %v1142, 2147516416
    %v1145 = vunpack.c.l.bf16 %v1143
    %v1146 = vunpack.c.l.bf16 %v1144
    %v1147 = vmul.f32 %v1145, 1.442695
    %v1148 = vpow.pop %v1147
    %v1149 = vmul.f32 %v1146, 1.442695
    %v1150 = vpow.pop %v1149
    %v1151 = vpack.c.bf16 %v1148, %v1148
    %v1152 = vpack.c.bf16 %v1150, %v1150
    %v1153 = vunpack.c.l.bf16 %v1151
    %v1154 = vunpack.c.l.bf16 %v1152
    %v1155 = vadd.f32 %v1153, 1.0
    %v1156 = vadd.f32 %v1154, 1.0
    %v1157 = vpack.c.bf16 %v1155, %v1155
    %v1158 = vpack.c.bf16 %v1156, %v1156
    %v1159 = vunpack.c.h.bf16 %v1157
    %v1160 = vunpack.c.l.bf16 %v1157
    %v1161 = vrcp.pop %v1159
    %v1162 = vmul.f32 %v331, %v1161
    %v1163 = vrcp.pop %v1160
    %v1164 = vmul.f32 %v332, %v1163
    %v1165 = vpack.c.bf16 %v1162, %v1164
    %v1166 = vunpack.c.h.bf16 %v1158
    %v1167 = vunpack.c.l.bf16 %v1158
    %v1168 = vrcp.pop %v1166
    %v1169 = vmul.f32 %v331, %v1168
    %v1170 = vrcp.pop %v1167
    %v1171 = vmul.f32 %v332, %v1170
    %v1172 = vpack.c.bf16 %v1169, %v1171
    %v1173 = vunpack.c.l.bf16 %v1141
    %v1174 = vunpack.c.l.bf16 %v1142
    %v1175 = vtanh.pop %v1173
    %v1176 = vtanh.pop %v1174
    %v1177 = vpack.c.bf16 %v1175, %v1175
    %v1178 = vpack.c.bf16 %v1176, %v1176
    %v1179 = vunpack.c.l.bf16 %v1165
    %v1180 = vunpack.c.l.bf16 %v1172
    %v1181 = vmul.f32 %v1179, %v1085
    %v1182 = vmul.f32 %v1180, %v1086
    %v1183 = vunpack.c.l.bf16 %v1177
    %v1184 = vunpack.c.l.bf16 %v1178
    %1187 = vrot.lane.b32.xlu0 %v1183, 32
    %v1188 = vpop.permute.xlu0 %1187
    %1189 = vrot.lane.b32.xlu0 %v1184, 32
    %v1190 = vpop.permute.xlu0 %1189
    %v1193 = vmul.f32 %v1179, %v1188
    %v1194 = vmul.f32 %v1180, %v1190
    %1197 = vrot.lane.b32.xlu0 %v1193, 32
    %v1198 = vpop.permute.xlu0 %1197
    %1199 = vrot.lane.b32.xlu0 %v1194, 32
    %v1200 = vpop.permute.xlu0 %1199
    %v1203 = vadd.f32 %v1181, %v1198
    %v1204 = vadd.f32 %v1182, %v1200
    %v1205 = vtanh.pop %v1203
    %v1206 = vtanh.pop %v1204
    %1209 = vrot.lane.b32.xlu0 %v1205, 32
    %v1210 = vpop.permute.xlu0 %1209
    %1211 = vrot.lane.b32.xlu0 %v1206, 32
    %v1212 = vpop.permute.xlu0 %1211
    %v1215 = vmul.f32 %v1179, %v1210
    %v1216 = vmul.f32 %v1180, %v1212
    %v1217 = vpack.c.bf16 %v1215, %v1215
    %v1218 = vpack.c.bf16 %v1216, %v1216
    %1221 = vrot.lane.b32.xlu0 %v1217, 64
    %v1222 = vpop.permute.xlu0 %1221
    %1223 = vrot.lane.b32.xlu0 %v1218, 64
    %v1224 = vpop.permute.xlu0 %1223
    %s1227 = scalar_lea.vmem [#allocation3], 56
    %1228 = vst.msk [vmem:[%s1227] sm:$0xf] %vm401, %v1222
    %1229 = vst.msk [vmem:[%s1227 + $0x4] sm:$0xf] %vm401, %v1224
    %v1230 = vld [vmem:[#allocation3] sm:$0xf]
    %v1231 = vld [vmem:[#allocation3 + $0x4] sm:$0xf]
    %v1232 = vld [vmem:[#allocation3 + $0x8] sm:$0xf]
    %v1233 = vld [vmem:[#allocation3 + $0xc] sm:$0xf]
    %v1234 = vld [vmem:[#allocation3 + $0x10] sm:$0xf]
    %v1235 = vld [vmem:[#allocation3 + $0x14] sm:$0xf]
    %v1236 = vld [vmem:[#allocation3 + $0x18] sm:$0xf]
    %v1237 = vld [vmem:[#allocation3 + $0x1c] sm:$0xf]
    %v1238 = vld [vmem:[#allocation3 + $0x20] sm:$0xf]
    %v1239 = vld [vmem:[#allocation3 + $0x24] sm:$0xf]
    %v1240 = vld [vmem:[#allocation3 + $0x28] sm:$0xf]
    %v1241 = vld [vmem:[#allocation3 + $0x2c] sm:$0xf]
    %v1242 = vld [vmem:[#allocation3 + $0x30] sm:$0xf]
    %v1243 = vld [vmem:[#allocation3 + $0x34] sm:$0xf]
    %v1244 = vld [vmem:[#allocation3 + $0x38] sm:$0xf]
    %v1245 = vld [vmem:[#allocation3 + $0x3c] sm:$0xf]
    %v1246 = vld [vmem:[#allocation4] sm:$0xf]
    %v1247 = vld [vmem:[#allocation4 + $0x4] sm:$0xf]
    %v1248 = vld [vmem:[#allocation4 + $0x8] sm:$0xf]
    %v1249 = vld [vmem:[#allocation4 + $0xc] sm:$0xf]
    %s1250 = scalar_lea.vmem %s4, 1
    %v1251 = vld [vmem:[%s1250] sm:$0x1]
    %v1253 = vperm.slane %v1251, 0
    %v1271 = vunpack.c.l.b16 %v1230
    %v1272 = vunpack.c.l.b16 %v1231
    %v1273 = vunpack.c.l.b16 %v1232
    %v1274 = vunpack.c.l.b16 %v1233
    %v1275 = vunpack.c.l.b16 %v1234
    %v1276 = vunpack.c.l.b16 %v1235
    %v1277 = vunpack.c.l.b16 %v1236
    %v1278 = vunpack.c.l.b16 %v1237
    %v1279 = vunpack.c.l.b16 %v1238
    %v1280 = vunpack.c.l.b16 %v1239
    %v1281 = vunpack.c.l.b16 %v1240
    %v1282 = vunpack.c.l.b16 %v1241
    %v1283 = vunpack.c.l.b16 %v1242
    %v1284 = vunpack.c.l.b16 %v1243
    %v1285 = vunpack.c.l.b16 %v1244
    %v1286 = vunpack.c.l.b16 %v1245
    %v1287 = vpack.c.b16 %v1272, %v1271
    %v1288 = vpack.c.b16 %v1274, %v1273
    %v1289 = vpack.c.b16 %v1276, %v1275
    %v1290 = vpack.c.b16 %v1278, %v1277
    %v1291 = vpack.c.b16 %v1280, %v1279
    %v1292 = vpack.c.b16 %v1282, %v1281
    %v1293 = vpack.c.b16 %v1284, %v1283
    %v1294 = vpack.c.b16 %v1286, %v1285
    %v1299 = vunpack.c.l.b16 %v1246
    %v1300 = vunpack.c.l.b16 %v1247
    %v1301 = vunpack.c.l.b16 %v1248
    %v1302 = vunpack.c.l.b16 %v1249
    %v1303 = vpack.c.b16 %v1300, %v1299
    %v1304 = vpack.c.b16 %v1302, %v1301
    %v1308 = vsel %vm291, %v1287, 0
    %v1311 = vsel %vm291, %v1288, 0
    %v1314 = vsel %vm291, %v1289, 0
    %v1317 = vsel %vm291, %v1290, 0
    %v1320 = vsel %vm291, %v1291, 0
    %v1323 = vsel %vm291, %v1292, 0
    %v1326 = vsel %vm291, %v1293, 0
    %v1329 = vsel %vm291, %v1294, 0
    %1331 = vmatpush.bf16.msra.mxu0 0
    %1332 = vmatpush.bf16.msra.mxu0 0
    %1333 = vmatpush.bf16.msra.mxu0 0
    %1334 = vmatpush.bf16.msra.mxu0 0
    %1335 = vmatpush.bf16.msra.mxu0 0
    %1336 = vmatpush.bf16.msra.mxu0 0
    %1337 = vmatpush.bf16.msra.mxu0 %v1304
    %1338 = vmatpush.bf16.msra.mxu0 %v1303
    %1339 = vmatmul.bf16.gmra.mxu0 %v1308
    %v1340 = vpop.f32.mrf.mxu0
    %v1341 = vadd.f32 %v1253, %v1340
    %v1342 = vpop.f32.mrf.mxu0
    %v1343 = vadd.f32 %v1253, %v1342
    %1344 = vmatmul.bf16.gmra.mxu0 %v1311
    %v1345 = vpop.f32.mrf.mxu0
    %v1346 = vadd.f32 %v1253, %v1345
    %v1347 = vpop.f32.mrf.mxu0
    %v1348 = vadd.f32 %v1253, %v1347
    %1349 = vmatmul.bf16.gmra.mxu0 %v1314
    %v1350 = vpop.f32.mrf.mxu0
    %v1351 = vadd.f32 %v1253, %v1350
    %v1352 = vpop.f32.mrf.mxu0
    %v1353 = vadd.f32 %v1253, %v1352
    %1354 = vmatmul.bf16.gmra.mxu0 %v1317
    %v1355 = vpop.f32.mrf.mxu0
    %v1356 = vadd.f32 %v1253, %v1355
    %v1357 = vpop.f32.mrf.mxu0
    %v1358 = vadd.f32 %v1253, %v1357
    %1359 = vmatmul.bf16.gmra.mxu0 %v1320
    %v1360 = vpop.f32.mrf.mxu0
    %v1361 = vadd.f32 %v1253, %v1360
    %v1362 = vpop.f32.mrf.mxu0
    %v1363 = vadd.f32 %v1253, %v1362
    %1364 = vmatmul.bf16.gmra.mxu0 %v1323
    %v1365 = vpop.f32.mrf.mxu0
    %v1366 = vadd.f32 %v1253, %v1365
    %v1367 = vpop.f32.mrf.mxu0
    %v1368 = vadd.f32 %v1253, %v1367
    %1369 = vmatmul.bf16.gmra.mxu0 %v1326
    %v1370 = vpop.f32.mrf.mxu0
    %v1371 = vadd.f32 %v1253, %v1370
    %v1372 = vpop.f32.mrf.mxu0
    %v1373 = vadd.f32 %v1253, %v1372
    %1374 = vmatmul.bf16.gmra.mxu0 %v1329
    %v1375 = vpop.f32.mrf.mxu0
    %v1376 = vadd.f32 %v1253, %v1375
    %v1377 = vpop.f32.mrf.mxu0
    %v1378 = vadd.f32 %v1253, %v1377
    %1379 = vdwg.mxu0
    %v1380 = vpack.c.bf16 %v1341, %v1341
    %v1381 = vpack.c.bf16 %v1343, %v1343
    %v1382 = vpack.c.bf16 %v1346, %v1346
    %v1383 = vpack.c.bf16 %v1348, %v1348
    %v1384 = vpack.c.bf16 %v1351, %v1351
    %v1385 = vpack.c.bf16 %v1353, %v1353
    %v1386 = vpack.c.bf16 %v1356, %v1356
    %v1387 = vpack.c.bf16 %v1358, %v1358
    %v1388 = vpack.c.bf16 %v1361, %v1361
    %v1389 = vpack.c.bf16 %v1363, %v1363
    %v1390 = vpack.c.bf16 %v1366, %v1366
    %v1391 = vpack.c.bf16 %v1368, %v1368
    %v1392 = vpack.c.bf16 %v1371, %v1371
    %v1393 = vpack.c.bf16 %v1373, %v1373
    %v1394 = vpack.c.bf16 %v1376, %v1376
    %v1395 = vpack.c.bf16 %v1378, %v1378
    %1396 = vst [vmem:[#allocation2] sm:$0xf] %v1380
    %1397 = vst [vmem:[#allocation2 + $0x4] sm:$0xf] %v1381
    %1398 = vst [vmem:[#allocation2 + $0x8] sm:$0xf] %v1382
    %1399 = vst [vmem:[#allocation2 + $0xc] sm:$0xf] %v1383
    %1400 = vst [vmem:[#allocation2 + $0x10] sm:$0xf] %v1384
    %1401 = vst [vmem:[#allocation2 + $0x14] sm:$0xf] %v1385
    %1402 = vst [vmem:[#allocation2 + $0x18] sm:$0xf] %v1386
    %1403 = vst [vmem:[#allocation2 + $0x1c] sm:$0xf] %v1387
    %1404 = vst [vmem:[#allocation2 + $0x20] sm:$0xf] %v1388
    %1405 = vst [vmem:[#allocation2 + $0x24] sm:$0xf] %v1389
    %1406 = vst [vmem:[#allocation2 + $0x28] sm:$0xf] %v1390
    %1407 = vst [vmem:[#allocation2 + $0x2c] sm:$0xf] %v1391
    %1408 = vst [vmem:[#allocation2 + $0x30] sm:$0xf] %v1392
    %1409 = vst [vmem:[#allocation2 + $0x34] sm:$0xf] %v1393
    %1410 = vst [vmem:[#allocation2 + $0x38] sm:$0xf] %v1394
    %1411 = vst [vmem:[#allocation2 + $0x3c] sm:$0xf] %v1395
    %s1412 = scalar_lea.vmem %s3, 16
    %v1413 = vld [vmem:[%s1412] sm:$0xf]
    %v1414 = vld [vmem:[%s1412 + $0x4] sm:$0xf]
    %v1415 = vld [vmem:[%s1412 + $0x8] sm:$0xf]
    %v1416 = vld [vmem:[%s1412 + $0xc] sm:$0xf]
    %v1417 = vld [vmem:[#allocation2] sm:$0xf]
    %v1418 = vld [vmem:[#allocation2 + $0x4] sm:$0xf]
    %v1423 = vunpack.c.l.b16 %v1413
    %v1424 = vunpack.c.l.b16 %v1414
    %v1425 = vunpack.c.l.b16 %v1415
    %v1426 = vunpack.c.l.b16 %v1416
    %v1427 = vpack.c.b16 %v1424, %v1423
    %v1428 = vpack.c.b16 %v1426, %v1425
    %1431 = vmatpush.bf16.msra.mxu0 0
    %1432 = vmatpush.bf16.msra.mxu0 0
    %1433 = vmatpush.bf16.msra.mxu0 0
    %1434 = vmatpush.bf16.msra.mxu0 0
    %1435 = vmatpush.bf16.msra.mxu0 0
    %1436 = vmatpush.bf16.msra.mxu0 0
    %1437 = vmatpush.bf16.msra.mxu0 %v1428
    %1438 = vmatpush.bf16.msra.mxu0 %v1427
    %1439 = vmatmul.bf16.gmra.mxu0 %v293
    %v1440 = vpop.f32.mrf.mxu0
    %v1441 = vadd.f32 0.0, %v1440
    %v1442 = vpop.f32.mrf.mxu0
    %v1443 = vadd.f32 0.0, %v1442
    %1444 = vdwg.mxu0
    %v1445 = vunpack.c.l.bf16 %v1417
    %v1446 = vunpack.c.l.bf16 %v1418
    %v1447 = vadd.f32 %v1445, %v1441
    %v1448 = vadd.f32 %v1446, %v1443
    %v1449 = vpack.c.bf16 %v1447, %v1447
    %v1450 = vpack.c.bf16 %v1448, %v1448
    %v1451 = vxor.u32 %v1449, 2147516416
    %v1452 = vxor.u32 %v1450, 2147516416
    %v1453 = vunpack.c.l.bf16 %v1451
    %v1454 = vunpack.c.l.bf16 %v1452
    %v1455 = vmul.f32 %v1453, 1.442695
    %v1456 = vpow.pop %v1455
    %v1457 = vmul.f32 %v1454, 1.442695
    %v1458 = vpow.pop %v1457
    %v1459 = vpack.c.bf16 %v1456, %v1456
    %v1460 = vpack.c.bf16 %v1458, %v1458
    %v1461 = vunpack.c.l.bf16 %v1459
    %v1462 = vunpack.c.l.bf16 %v1460
    %v1463 = vadd.f32 %v1461, 1.0
    %v1464 = vadd.f32 %v1462, 1.0
    %v1465 = vpack.c.bf16 %v1463, %v1463
    %v1466 = vpack.c.bf16 %v1464, %v1464
    %v1467 = vunpack.c.h.bf16 %v1465
    %v1468 = vunpack.c.l.bf16 %v1465
    %v1469 = vrcp.pop %v1467
    %v1470 = vmul.f32 %v331, %v1469
    %v1471 = vrcp.pop %v1468
    %v1472 = vmul.f32 %v332, %v1471
    %v1473 = vpack.c.bf16 %v1470, %v1472
    %v1474 = vunpack.c.h.bf16 %v1466
    %v1475 = vunpack.c.l.bf16 %v1466
    %v1476 = vrcp.pop %v1474
    %v1477 = vmul.f32 %v331, %v1476
    %v1478 = vrcp.pop %v1475
    %v1479 = vmul.f32 %v332, %v1478
    %v1480 = vpack.c.bf16 %v1477, %v1479
    %v1481 = vunpack.c.l.bf16 %v1449
    %v1482 = vunpack.c.l.bf16 %v1450
    %v1483 = vtanh.pop %v1481
    %v1484 = vtanh.pop %v1482
    %v1485 = vpack.c.bf16 %v1483, %v1483
    %v1486 = vpack.c.bf16 %v1484, %v1484
    %v1487 = vunpack.c.l.bf16 %v1473
    %v1488 = vunpack.c.l.bf16 %v1480
    %v1489 = vmul.f32 %v1487, 0.0
    %v1490 = vmul.f32 %v1488, 0.0
    %v1491 = vunpack.c.l.bf16 %v1485
    %v1492 = vunpack.c.l.bf16 %v1486
    %1495 = vrot.lane.b32.xlu0 %v1491, 32
    %v1496 = vpop.permute.xlu0 %1495
    %1497 = vrot.lane.b32.xlu0 %v1492, 32
    %v1498 = vpop.permute.xlu0 %1497
    %v1501 = vmul.f32 %v1487, %v1496
    %v1502 = vmul.f32 %v1488, %v1498
    %1505 = vrot.lane.b32.xlu0 %v1501, 32
    %v1506 = vpop.permute.xlu0 %1505
    %1507 = vrot.lane.b32.xlu0 %v1502, 32
    %v1508 = vpop.permute.xlu0 %1507
    %v1511 = vadd.f32 %v1489, %v1506
    %v1512 = vadd.f32 %v1490, %v1508
    %v1513 = vtanh.pop %v1511
    %v1514 = vtanh.pop %v1512
    %1517 = vrot.lane.b32.xlu0 %v1513, 32
    %v1518 = vpop.permute.xlu0 %1517
    %1519 = vrot.lane.b32.xlu0 %v1514, 32
    %v1520 = vpop.permute.xlu0 %1519
    %v1523 = vmul.f32 %v1487, %v1518
    %v1524 = vmul.f32 %v1488, %v1520
    %v1525 = vpack.c.bf16 %v1524, %v1523
    %v1526 = vld [vmem:[%s404] sm:$0xf]
    %v1527 = vld [vmem:[%s404 + $0x4] sm:$0xf]
    %1529 = vrot.lane.b32.xlu0 %v1525, 64
    %v1530 = vpop.permute.xlu0 %1529
    %v1532 = vsel %vm291, %v1530, 0
    %1534 = vmatpush.bf16.msra.mxu0 0
    %1535 = vmatpush.bf16.msra.mxu0 0
    %1536 = vmatpush.bf16.msra.mxu0 0
    %1537 = vmatpush.bf16.msra.mxu0 0
    %1538 = vmatpush.bf16.msra.mxu0 0
    %1539 = vmatpush.bf16.msra.mxu0 0
    %1540 = vmatpush.bf16.msra.mxu0 %v1428
    %1541 = vmatpush.bf16.msra.mxu0 %v1427
    %1542 = vmatmul.bf16.gmra.mxu0 %v1532
    %v1543 = vpop.f32.mrf.mxu0
    %v1544 = vadd.f32 0.0, %v1543
    %v1545 = vpop.f32.mrf.mxu0
    %v1546 = vadd.f32 0.0, %v1545
    %1547 = vdwg.mxu0
    %v1548 = vunpack.c.l.bf16 %v1526
    %v1549 = vunpack.c.l.bf16 %v1527
    %v1550 = vadd.f32 %v1548, %v1544
    %v1551 = vadd.f32 %v1549, %v1546
    %v1552 = vpack.c.bf16 %v1550, %v1550
    %v1553 = vpack.c.bf16 %v1551, %v1551
    %v1554 = vxor.u32 %v1552, 2147516416
    %v1555 = vxor.u32 %v1553, 2147516416
    %v1556 = vunpack.c.l.bf16 %v1554
    %v1557 = vunpack.c.l.bf16 %v1555
    %v1558 = vmul.f32 %v1556, 1.442695
    %v1559 = vpow.pop %v1558
    %v1560 = vmul.f32 %v1557, 1.442695
    %v1561 = vpow.pop %v1560
    %v1562 = vpack.c.bf16 %v1559, %v1559
    %v1563 = vpack.c.bf16 %v1561, %v1561
    %v1564 = vunpack.c.l.bf16 %v1562
    %v1565 = vunpack.c.l.bf16 %v1563
    %v1566 = vadd.f32 %v1564, 1.0
    %v1567 = vadd.f32 %v1565, 1.0
    %v1568 = vpack.c.bf16 %v1566, %v1566
    %v1569 = vpack.c.bf16 %v1567, %v1567
    %v1570 = vunpack.c.h.bf16 %v1568
    %v1571 = vunpack.c.l.bf16 %v1568
    %v1572 = vrcp.pop %v1570
    %v1573 = vmul.f32 %v331, %v1572
    %v1574 = vrcp.pop %v1571
    %v1575 = vmul.f32 %v332, %v1574
    %v1576 = vpack.c.bf16 %v1573, %v1575
    %v1577 = vunpack.c.h.bf16 %v1569
    %v1578 = vunpack.c.l.bf16 %v1569
    %v1579 = vrcp.pop %v1577
    %v1580 = vmul.f32 %v331, %v1579
    %v1581 = vrcp.pop %v1578
    %v1582 = vmul.f32 %v332, %v1581
    %v1583 = vpack.c.bf16 %v1580, %v1582
    %v1584 = vunpack.c.l.bf16 %v1552
    %v1585 = vunpack.c.l.bf16 %v1553
    %v1586 = vtanh.pop %v1584
    %v1587 = vtanh.pop %v1585
    %v1588 = vpack.c.bf16 %v1586, %v1586
    %v1589 = vpack.c.bf16 %v1587, %v1587
    %v1590 = vunpack.c.l.bf16 %v1576
    %v1591 = vunpack.c.l.bf16 %v1583
    %v1592 = vmul.f32 %v1590, %v1511
    %v1593 = vmul.f32 %v1591, %v1512
    %v1594 = vunpack.c.l.bf16 %v1588
    %v1595 = vunpack.c.l.bf16 %v1589
    %1598 = vrot.lane.b32.xlu0 %v1594, 32
    %v1599 = vpop.permute.xlu0 %1598
    %1600 = vrot.lane.b32.xlu0 %v1595, 32
    %v1601 = vpop.permute.xlu0 %1600
    %v1604 = vmul.f32 %v1590, %v1599
    %v1605 = vmul.f32 %v1591, %v1601
    %1608 = vrot.lane.b32.xlu0 %v1604, 32
    %v1609 = vpop.permute.xlu0 %1608
    %1610 = vrot.lane.b32.xlu0 %v1605, 32
    %v1611 = vpop.permute.xlu0 %1610
    %v1614 = vadd.f32 %v1592, %v1609
    %v1615 = vadd.f32 %v1593, %v1611
    %v1616 = vtanh.pop %v1614
    %v1617 = vtanh.pop %v1615
    %1620 = vrot.lane.b32.xlu0 %v1616, 32
    %v1621 = vpop.permute.xlu0 %1620
    %1622 = vrot.lane.b32.xlu0 %v1617, 32
    %v1623 = vpop.permute.xlu0 %1622
    %v1626 = vmul.f32 %v1590, %v1621
    %v1627 = vmul.f32 %v1591, %v1623
    %v1628 = vpack.c.bf16 %v1627, %v1626
    %v1629 = vld [vmem:[%s522] sm:$0xf]
    %v1630 = vld [vmem:[%s522 + $0x4] sm:$0xf]
    %1632 = vrot.lane.b32.xlu0 %v1628, 64
    %v1633 = vpop.permute.xlu0 %1632
    %v1635 = vsel %vm291, %v1633, 0
    %1637 = vmatpush.bf16.msra.mxu0 0
    %1638 = vmatpush.bf16.msra.mxu0 0
    %1639 = vmatpush.bf16.msra.mxu0 0
    %1640 = vmatpush.bf16.msra.mxu0 0
    %1641 = vmatpush.bf16.msra.mxu0 0
    %1642 = vmatpush.bf16.msra.mxu0 0
    %1643 = vmatpush.bf16.msra.mxu0 %v1428
    %1644 = vmatpush.bf16.msra.mxu0 %v1427
    %1645 = vmatmul.bf16.gmra.mxu0 %v1635
    %v1646 = vpop.f32.mrf.mxu0
    %v1647 = vadd.f32 0.0, %v1646
    %v1648 = vpop.f32.mrf.mxu0
    %v1649 = vadd.f32 0.0, %v1648
    %1650 = vdwg.mxu0
    %v1651 = vunpack.c.l.bf16 %v1629
    %v1652 = vunpack.c.l.bf16 %v1630
    %v1653 = vadd.f32 %v1651, %v1647
    %v1654 = vadd.f32 %v1652, %v1649
    %v1655 = vpack.c.bf16 %v1653, %v1653
    %v1656 = vpack.c.bf16 %v1654, %v1654
    %v1657 = vxor.u32 %v1655, 2147516416
    %v1658 = vxor.u32 %v1656, 2147516416
    %v1659 = vunpack.c.l.bf16 %v1657
    %v1660 = vunpack.c.l.bf16 %v1658
    %v1661 = vmul.f32 %v1659, 1.442695
    %v1662 = vpow.pop %v1661
    %v1663 = vmul.f32 %v1660, 1.442695
    %v1664 = vpow.pop %v1663
    %v1665 = vpack.c.bf16 %v1662, %v1662
    %v1666 = vpack.c.bf16 %v1664, %v1664
    %v1667 = vunpack.c.l.bf16 %v1665
    %v1668 = vunpack.c.l.bf16 %v1666
    %v1669 = vadd.f32 %v1667, 1.0
    %v1670 = vadd.f32 %v1668, 1.0
    %v1671 = vpack.c.bf16 %v1669, %v1669
    %v1672 = vpack.c.bf16 %v1670, %v1670
    %v1673 = vunpack.c.h.bf16 %v1671
    %v1674 = vunpack.c.l.bf16 %v1671
    %v1675 = vrcp.pop %v1673
    %v1676 = vmul.f32 %v331, %v1675
    %v1677 = vrcp.pop %v1674
    %v1678 = vmul.f32 %v332, %v1677
    %v1679 = vpack.c.bf16 %v1676, %v1678
    %v1680 = vunpack.c.h.bf16 %v1672
    %v1681 = vunpack.c.l.bf16 %v1672
    %v1682 = vrcp.pop %v1680
    %v1683 = vmul.f32 %v331, %v1682
    %v1684 = vrcp.pop %v1681
    %v1685 = vmul.f32 %v332, %v1684
    %v1686 = vpack.c.bf16 %v1683, %v1685
    %v1687 = vunpack.c.l.bf16 %v1655
    %v1688 = vunpack.c.l.bf16 %v1656
    %v1689 = vtanh.pop %v1687
    %v1690 = vtanh.pop %v1688
    %v1691 = vpack.c.bf16 %v1689, %v1689
    %v1692 = vpack.c.bf16 %v1690, %v1690
    %v1693 = vunpack.c.l.bf16 %v1679
    %v1694 = vunpack.c.l.bf16 %v1686
    %v1695 = vmul.f32 %v1693, %v1614
    %v1696 = vmul.f32 %v1694, %v1615
    %v1697 = vunpack.c.l.bf16 %v1691
    %v1698 = vunpack.c.l.bf16 %v1692
    %1701 = vrot.lane.b32.xlu0 %v1697, 32
    %v1702 = vpop.permute.xlu0 %1701
    %1703 = vrot.lane.b32.xlu0 %v1698, 32
    %v1704 = vpop.permute.xlu0 %1703
    %v1707 = vmul.f32 %v1693, %v1702
    %v1708 = vmul.f32 %v1694, %v1704
    %1711 = vrot.lane.b32.xlu0 %v1707, 32
    %v1712 = vpop.permute.xlu0 %1711
    %1713 = vrot.lane.b32.xlu0 %v1708, 32
    %v1714 = vpop.permute.xlu0 %1713
    %v1717 = vadd.f32 %v1695, %v1712
    %v1718 = vadd.f32 %v1696, %v1714
    %v1719 = vtanh.pop %v1717
    %v1720 = vtanh.pop %v1718
    %1723 = vrot.lane.b32.xlu0 %v1719, 32
    %v1724 = vpop.permute.xlu0 %1723
    %1725 = vrot.lane.b32.xlu0 %v1720, 32
    %v1726 = vpop.permute.xlu0 %1725
    %v1729 = vmul.f32 %v1693, %v1724
    %v1730 = vmul.f32 %v1694, %v1726
    %v1731 = vpack.c.bf16 %v1730, %v1729
    %v1732 = vld [vmem:[%s640] sm:$0xf]
    %v1733 = vld [vmem:[%s640 + $0x4] sm:$0xf]
    %1735 = vrot.lane.b32.xlu0 %v1731, 64
    %v1736 = vpop.permute.xlu0 %1735
    %v1738 = vsel %vm291, %v1736, 0
    %1740 = vmatpush.bf16.msra.mxu0 0
    %1741 = vmatpush.bf16.msra.mxu0 0
    %1742 = vmatpush.bf16.msra.mxu0 0
    %1743 = vmatpush.bf16.msra.mxu0 0
    %1744 = vmatpush.bf16.msra.mxu0 0
    %1745 = vmatpush.bf16.msra.mxu0 0
    %1746 = vmatpush.bf16.msra.mxu0 %v1428
    %1747 = vmatpush.bf16.msra.mxu0 %v1427
    %1748 = vmatmul.bf16.gmra.mxu0 %v1738
    %v1749 = vpop.f32.mrf.mxu0
    %v1750 = vadd.f32 0.0, %v1749
    %v1751 = vpop.f32.mrf.mxu0
    %v1752 = vadd.f32 0.0, %v1751
    %1753 = vdwg.mxu0
    %v1754 = vunpack.c.l.bf16 %v1732
    %v1755 = vunpack.c.l.bf16 %v1733
    %v1756 = vadd.f32 %v1754, %v1750
    %v1757 = vadd.f32 %v1755, %v1752
    %v1758 = vpack.c.bf16 %v1756, %v1756
    %v1759 = vpack.c.bf16 %v1757, %v1757
    %v1760 = vxor.u32 %v1758, 2147516416
    %v1761 = vxor.u32 %v1759, 2147516416
    %v1762 = vunpack.c.l.bf16 %v1760
    %v1763 = vunpack.c.l.bf16 %v1761
    %v1764 = vmul.f32 %v1762, 1.442695
    %v1765 = vpow.pop %v1764
    %v1766 = vmul.f32 %v1763, 1.442695
    %v1767 = vpow.pop %v1766
    %v1768 = vpack.c.bf16 %v1765, %v1765
    %v1769 = vpack.c.bf16 %v1767, %v1767
    %v1770 = vunpack.c.l.bf16 %v1768
    %v1771 = vunpack.c.l.bf16 %v1769
    %v1772 = vadd.f32 %v1770, 1.0
    %v1773 = vadd.f32 %v1771, 1.0
    %v1774 = vpack.c.bf16 %v1772, %v1772
    %v1775 = vpack.c.bf16 %v1773, %v1773
    %v1776 = vunpack.c.h.bf16 %v1774
    %v1777 = vunpack.c.l.bf16 %v1774
    %v1778 = vrcp.pop %v1776
    %v1779 = vmul.f32 %v331, %v1778
    %v1780 = vrcp.pop %v1777
    %v1781 = vmul.f32 %v332, %v1780
    %v1782 = vpack.c.bf16 %v1779, %v1781
    %v1783 = vunpack.c.h.bf16 %v1775
    %v1784 = vunpack.c.l.bf16 %v1775
    %v1785 = vrcp.pop %v1783
    %v1786 = vmul.f32 %v331, %v1785
    %v1787 = vrcp.pop %v1784
    %v1788 = vmul.f32 %v332, %v1787
    %v1789 = vpack.c.bf16 %v1786, %v1788
    %v1790 = vunpack.c.l.bf16 %v1758
    %v1791 = vunpack.c.l.bf16 %v1759
    %v1792 = vtanh.pop %v1790
    %v1793 = vtanh.pop %v1791
    %v1794 = vpack.c.bf16 %v1792, %v1792
    %v1795 = vpack.c.bf16 %v1793, %v1793
    %v1796 = vunpack.c.l.bf16 %v1782
    %v1797 = vunpack.c.l.bf16 %v1789
    %v1798 = vmul.f32 %v1796, %v1717
    %v1799 = vmul.f32 %v1797, %v1718
    %v1800 = vunpack.c.l.bf16 %v1794
    %v1801 = vunpack.c.l.bf16 %v1795
    %1804 = vrot.lane.b32.xlu0 %v1800, 32
    %v1805 = vpop.permute.xlu0 %1804
    %1806 = vrot.lane.b32.xlu0 %v1801, 32
    %v1807 = vpop.permute.xlu0 %1806
    %v1810 = vmul.f32 %v1796, %v1805
    %v1811 = vmul.f32 %v1797, %v1807
    %1814 = vrot.lane.b32.xlu0 %v1810, 32
    %v1815 = vpop.permute.xlu0 %1814
    %1816 = vrot.lane.b32.xlu0 %v1811, 32
    %v1817 = vpop.permute.xlu0 %1816
    %v1820 = vadd.f32 %v1798, %v1815
    %v1821 = vadd.f32 %v1799, %v1817
    %v1822 = vtanh.pop %v1820
    %v1823 = vtanh.pop %v1821
    %1826 = vrot.lane.b32.xlu0 %v1822, 32
    %v1827 = vpop.permute.xlu0 %1826
    %1828 = vrot.lane.b32.xlu0 %v1823, 32
    %v1829 = vpop.permute.xlu0 %1828
    %v1832 = vmul.f32 %v1796, %v1827
    %v1833 = vmul.f32 %v1797, %v1829
    %v1834 = vpack.c.bf16 %v1833, %v1832
    %v1835 = vld [vmem:[%s758] sm:$0xf]
    %v1836 = vld [vmem:[%s758 + $0x4] sm:$0xf]
    %1838 = vrot.lane.b32.xlu0 %v1834, 64
    %v1839 = vpop.permute.xlu0 %1838
    %v1841 = vsel %vm291, %v1839, 0
    %1843 = vmatpush.bf16.msra.mxu0 0
    %1844 = vmatpush.bf16.msra.mxu0 0
    %1845 = vmatpush.bf16.msra.mxu0 0
    %1846 = vmatpush.bf16.msra.mxu0 0
    %1847 = vmatpush.bf16.msra.mxu0 0
    %1848 = vmatpush.bf16.msra.mxu0 0
    %1849 = vmatpush.bf16.msra.mxu0 %v1428
    %1850 = vmatpush.bf16.msra.mxu0 %v1427
    %1851 = vmatmul.bf16.gmra.mxu0 %v1841
    %v1852 = vpop.f32.mrf.mxu0
    %v1853 = vadd.f32 0.0, %v1852
    %v1854 = vpop.f32.mrf.mxu0
    %v1855 = vadd.f32 0.0, %v1854
    %1856 = vdwg.mxu0
    %v1857 = vunpack.c.l.bf16 %v1835
    %v1858 = vunpack.c.l.bf16 %v1836
    %v1859 = vadd.f32 %v1857, %v1853
    %v1860 = vadd.f32 %v1858, %v1855
    %v1861 = vpack.c.bf16 %v1859, %v1859
    %v1862 = vpack.c.bf16 %v1860, %v1860
    %v1863 = vxor.u32 %v1861, 2147516416
    %v1864 = vxor.u32 %v1862, 2147516416
    %v1865 = vunpack.c.l.bf16 %v1863
    %v1866 = vunpack.c.l.bf16 %v1864
    %v1867 = vmul.f32 %v1865, 1.442695
    %v1868 = vpow.pop %v1867
    %v1869 = vmul.f32 %v1866, 1.442695
    %v1870 = vpow.pop %v1869
    %v1871 = vpack.c.bf16 %v1868, %v1868
    %v1872 = vpack.c.bf16 %v1870, %v1870
    %v1873 = vunpack.c.l.bf16 %v1871
    %v1874 = vunpack.c.l.bf16 %v1872
    %v1875 = vadd.f32 %v1873, 1.0
    %v1876 = vadd.f32 %v1874, 1.0
    %v1877 = vpack.c.bf16 %v1875, %v1875
    %v1878 = vpack.c.bf16 %v1876, %v1876
    %v1879 = vunpack.c.h.bf16 %v1877
    %v1880 = vunpack.c.l.bf16 %v1877
    %v1881 = vrcp.pop %v1879
    %v1882 = vmul.f32 %v331, %v1881
    %v1883 = vrcp.pop %v1880
    %v1884 = vmul.f32 %v332, %v1883
    %v1885 = vpack.c.bf16 %v1882, %v1884
    %v1886 = vunpack.c.h.bf16 %v1878
    %v1887 = vunpack.c.l.bf16 %v1878
    %v1888 = vrcp.pop %v1886
    %v1889 = vmul.f32 %v331, %v1888
    %v1890 = vrcp.pop %v1887
    %v1891 = vmul.f32 %v332, %v1890
    %v1892 = vpack.c.bf16 %v1889, %v1891
    %v1893 = vunpack.c.l.bf16 %v1861
    %v1894 = vunpack.c.l.bf16 %v1862
    %v1895 = vtanh.pop %v1893
    %v1896 = vtanh.pop %v1894
    %v1897 = vpack.c.bf16 %v1895, %v1895
    %v1898 = vpack.c.bf16 %v1896, %v1896
    %v1899 = vunpack.c.l.bf16 %v1885
    %v1900 = vunpack.c.l.bf16 %v1892
    %v1901 = vmul.f32 %v1899, %v1820
    %v1902 = vmul.f32 %v1900, %v1821
    %v1903 = vunpack.c.l.bf16 %v1897
    %v1904 = vunpack.c.l.bf16 %v1898
    %1907 = vrot.lane.b32.xlu0 %v1903, 32
    %v1908 = vpop.permute.xlu0 %1907
    %1909 = vrot.lane.b32.xlu0 %v1904, 32
    %v1910 = vpop.permute.xlu0 %1909
    %v1913 = vmul.f32 %v1899, %v1908
    %v1914 = vmul.f32 %v1900, %v1910
    %1917 = vrot.lane.b32.xlu0 %v1913, 32
    %v1918 = vpop.permute.xlu0 %1917
    %1919 = vrot.lane.b32.xlu0 %v1914, 32
    %v1920 = vpop.permute.xlu0 %1919
    %v1923 = vadd.f32 %v1901, %v1918
    %v1924 = vadd.f32 %v1902, %v1920
    %v1925 = vtanh.pop %v1923
    %v1926 = vtanh.pop %v1924
    %1929 = vrot.lane.b32.xlu0 %v1925, 32
    %v1930 = vpop.permute.xlu0 %1929
    %1931 = vrot.lane.b32.xlu0 %v1926, 32
    %v1932 = vpop.permute.xlu0 %1931
    %v1935 = vmul.f32 %v1899, %v1930
    %v1936 = vmul.f32 %v1900, %v1932
    %v1937 = vpack.c.bf16 %v1936, %v1935
    %v1938 = vld [vmem:[%s876] sm:$0xf]
    %v1939 = vld [vmem:[%s876 + $0x4] sm:$0xf]
    %1941 = vrot.lane.b32.xlu0 %v1937, 64
    %v1942 = vpop.permute.xlu0 %1941
    %v1944 = vsel %vm291, %v1942, 0
    %1946 = vmatpush.bf16.msra.mxu0 0
    %1947 = vmatpush.bf16.msra.mxu0 0
    %1948 = vmatpush.bf16.msra.mxu0 0
    %1949 = vmatpush.bf16.msra.mxu0 0
    %1950 = vmatpush.bf16.msra.mxu0 0
    %1951 = vmatpush.bf16.msra.mxu0 0
    %1952 = vmatpush.bf16.msra.mxu0 %v1428
    %1953 = vmatpush.bf16.msra.mxu0 %v1427
    %1954 = vmatmul.bf16.gmra.mxu0 %v1944
    %v1955 = vpop.f32.mrf.mxu0
    %v1956 = vadd.f32 0.0, %v1955
    %v1957 = vpop.f32.mrf.mxu0
    %v1958 = vadd.f32 0.0, %v1957
    %1959 = vdwg.mxu0
    %v1960 = vunpack.c.l.bf16 %v1938
    %v1961 = vunpack.c.l.bf16 %v1939
    %v1962 = vadd.f32 %v1960, %v1956
    %v1963 = vadd.f32 %v1961, %v1958
    %v1964 = vpack.c.bf16 %v1962, %v1962
    %v1965 = vpack.c.bf16 %v1963, %v1963
    %v1966 = vxor.u32 %v1964, 2147516416
    %v1967 = vxor.u32 %v1965, 2147516416
    %v1968 = vunpack.c.l.bf16 %v1966
    %v1969 = vunpack.c.l.bf16 %v1967
    %v1970 = vmul.f32 %v1968, 1.442695
    %v1971 = vpow.pop %v1970
    %v1972 = vmul.f32 %v1969, 1.442695
    %v1973 = vpow.pop %v1972
    %v1974 = vpack.c.bf16 %v1971, %v1971
    %v1975 = vpack.c.bf16 %v1973, %v1973
    %v1976 = vunpack.c.l.bf16 %v1974
    %v1977 = vunpack.c.l.bf16 %v1975
    %v1978 = vadd.f32 %v1976, 1.0
    %v1979 = vadd.f32 %v1977, 1.0
    %v1980 = vpack.c.bf16 %v1978, %v1978
    %v1981 = vpack.c.bf16 %v1979, %v1979
    %v1982 = vunpack.c.h.bf16 %v1980
    %v1983 = vunpack.c.l.bf16 %v1980
    %v1984 = vrcp.pop %v1982
    %v1985 = vmul.f32 %v331, %v1984
    %v1986 = vrcp.pop %v1983
    %v1987 = vmul.f32 %v332, %v1986
    %v1988 = vpack.c.bf16 %v1985, %v1987
    %v1989 = vunpack.c.h.bf16 %v1981
    %v1990 = vunpack.c.l.bf16 %v1981
    %v1991 = vrcp.pop %v1989
    %v1992 = vmul.f32 %v331, %v1991
    %v1993 = vrcp.pop %v1990
    %v1994 = vmul.f32 %v332, %v1993
    %v1995 = vpack.c.bf16 %v1992, %v1994
    %v1996 = vunpack.c.l.bf16 %v1964
    %v1997 = vunpack.c.l.bf16 %v1965
    %v1998 = vtanh.pop %v1996
    %v1999 = vtanh.pop %v1997
    %v2000 = vpack.c.bf16 %v1998, %v1998
    %v2001 = vpack.c.bf16 %v1999, %v1999
    %v2002 = vunpack.c.l.bf16 %v1988
    %v2003 = vunpack.c.l.bf16 %v1995
    %v2004 = vmul.f32 %v2002, %v1923
    %v2005 = vmul.f32 %v2003, %v1924
    %v2006 = vunpack.c.l.bf16 %v2000
    %v2007 = vunpack.c.l.bf16 %v2001
    %2010 = vrot.lane.b32.xlu0 %v2006, 32
    %v2011 = vpop.permute.xlu0 %2010
    %2012 = vrot.lane.b32.xlu0 %v2007, 32
    %v2013 = vpop.permute.xlu0 %2012
    %v2016 = vmul.f32 %v2002, %v2011
    %v2017 = vmul.f32 %v2003, %v2013
    %2020 = vrot.lane.b32.xlu0 %v2016, 32
    %v2021 = vpop.permute.xlu0 %2020
    %2022 = vrot.lane.b32.xlu0 %v2017, 32
    %v2023 = vpop.permute.xlu0 %2022
    %v2026 = vadd.f32 %v2004, %v2021
    %v2027 = vadd.f32 %v2005, %v2023
    %v2028 = vtanh.pop %v2026
    %v2029 = vtanh.pop %v2027
    %2032 = vrot.lane.b32.xlu0 %v2028, 32
    %v2033 = vpop.permute.xlu0 %2032
    %2034 = vrot.lane.b32.xlu0 %v2029, 32
    %v2035 = vpop.permute.xlu0 %2034
    %v2038 = vmul.f32 %v2002, %v2033
    %v2039 = vmul.f32 %v2003, %v2035
    %v2040 = vpack.c.bf16 %v2039, %v2038
    %v2041 = vld [vmem:[%s994] sm:$0xf]
    %v2042 = vld [vmem:[%s994 + $0x4] sm:$0xf]
    %2044 = vrot.lane.b32.xlu0 %v2040, 64
    %v2045 = vpop.permute.xlu0 %2044
    %v2047 = vsel %vm291, %v2045, 0
    %2049 = vmatpush.bf16.msra.mxu0 0
    %2050 = vmatpush.bf16.msra.mxu0 0
    %2051 = vmatpush.bf16.msra.mxu0 0
    %2052 = vmatpush.bf16.msra.mxu0 0
    %2053 = vmatpush.bf16.msra.mxu0 0
    %2054 = vmatpush.bf16.msra.mxu0 0
    %2055 = vmatpush.bf16.msra.mxu0 %v1428
    %2056 = vmatpush.bf16.msra.mxu0 %v1427
    %2057 = vmatmul.bf16.gmra.mxu0 %v2047
    %v2058 = vpop.f32.mrf.mxu0
    %v2059 = vadd.f32 0.0, %v2058
    %v2060 = vpop.f32.mrf.mxu0
    %v2061 = vadd.f32 0.0, %v2060
    %2062 = vdwg.mxu0
    %v2063 = vunpack.c.l.bf16 %v2041
    %v2064 = vunpack.c.l.bf16 %v2042
    %v2065 = vadd.f32 %v2063, %v2059
    %v2066 = vadd.f32 %v2064, %v2061
    %v2067 = vpack.c.bf16 %v2065, %v2065
    %v2068 = vpack.c.bf16 %v2066, %v2066
    %v2069 = vxor.u32 %v2067, 2147516416
    %v2070 = vxor.u32 %v2068, 2147516416
    %v2071 = vunpack.c.l.bf16 %v2069
    %v2072 = vunpack.c.l.bf16 %v2070
    %v2073 = vmul.f32 %v2071, 1.442695
    %v2074 = vpow.pop %v2073
    %v2075 = vmul.f32 %v2072, 1.442695
    %v2076 = vpow.pop %v2075
    %v2077 = vpack.c.bf16 %v2074, %v2074
    %v2078 = vpack.c.bf16 %v2076, %v2076
    %v2079 = vunpack.c.l.bf16 %v2077
    %v2080 = vunpack.c.l.bf16 %v2078
    %v2081 = vadd.f32 %v2079, 1.0
    %v2082 = vadd.f32 %v2080, 1.0
    %v2083 = vpack.c.bf16 %v2081, %v2081
    %v2084 = vpack.c.bf16 %v2082, %v2082
    %v2085 = vunpack.c.h.bf16 %v2083
    %v2086 = vunpack.c.l.bf16 %v2083
    %v2087 = vrcp.pop %v2085
    %v2088 = vmul.f32 %v331, %v2087
    %v2089 = vrcp.pop %v2086
    %v2090 = vmul.f32 %v332, %v2089
    %v2091 = vpack.c.bf16 %v2088, %v2090
    %v2092 = vunpack.c.h.bf16 %v2084
    %v2093 = vunpack.c.l.bf16 %v2084
    %v2094 = vrcp.pop %v2092
    %v2095 = vmul.f32 %v331, %v2094
    %v2096 = vrcp.pop %v2093
    %v2097 = vmul.f32 %v332, %v2096
    %v2098 = vpack.c.bf16 %v2095, %v2097
    %v2099 = vunpack.c.l.bf16 %v2067
    %v2100 = vunpack.c.l.bf16 %v2068
    %v2101 = vtanh.pop %v2099
    %v2102 = vtanh.pop %v2100
    %v2103 = vpack.c.bf16 %v2101, %v2101
    %v2104 = vpack.c.bf16 %v2102, %v2102
    %v2105 = vunpack.c.l.bf16 %v2091
    %v2106 = vunpack.c.l.bf16 %v2098
    %v2107 = vmul.f32 %v2105, %v2026
    %v2108 = vmul.f32 %v2106, %v2027
    %v2109 = vunpack.c.l.bf16 %v2103
    %v2110 = vunpack.c.l.bf16 %v2104
    %2113 = vrot.lane.b32.xlu0 %v2109, 32
    %v2114 = vpop.permute.xlu0 %2113
    %2115 = vrot.lane.b32.xlu0 %v2110, 32
    %v2116 = vpop.permute.xlu0 %2115
    %v2119 = vmul.f32 %v2105, %v2114
    %v2120 = vmul.f32 %v2106, %v2116
    %2123 = vrot.lane.b32.xlu0 %v2119, 32
    %v2124 = vpop.permute.xlu0 %2123
    %2125 = vrot.lane.b32.xlu0 %v2120, 32
    %v2126 = vpop.permute.xlu0 %2125
    %v2129 = vadd.f32 %v2107, %v2124
    %v2130 = vadd.f32 %v2108, %v2126
    %v2131 = vtanh.pop %v2129
    %v2132 = vtanh.pop %v2130
    %2135 = vrot.lane.b32.xlu0 %v2131, 32
    %v2136 = vpop.permute.xlu0 %2135
    %2137 = vrot.lane.b32.xlu0 %v2132, 32
    %v2138 = vpop.permute.xlu0 %2137
    %v2141 = vmul.f32 %v2105, %v2136
    %v2142 = vmul.f32 %v2106, %v2138
    %v2143 = vpack.c.bf16 %v2142, %v2141
    %v2144 = vld [vmem:[%s1112] sm:$0xf]
    %v2145 = vld [vmem:[%s1112 + $0x4] sm:$0xf]
    %2147 = vrot.lane.b32.xlu0 %v2143, 64
    %v2148 = vpop.permute.xlu0 %2147
    %v2150 = vsel %vm291, %v2148, 0
    %2152 = vmatpush.bf16.msra.mxu0 0
    %2153 = vmatpush.bf16.msra.mxu0 0
    %2154 = vmatpush.bf16.msra.mxu0 0
    %2155 = vmatpush.bf16.msra.mxu0 0
    %2156 = vmatpush.bf16.msra.mxu0 0
    %2157 = vmatpush.bf16.msra.mxu0 0
    %2158 = vmatpush.bf16.msra.mxu0 %v1428
    %2159 = vmatpush.bf16.msra.mxu0 %v1427
    %2160 = vmatmul.bf16.gmra.mxu0 %v2150
    %v2161 = vpop.f32.mrf.mxu0
    %v2162 = vadd.f32 0.0, %v2161
    %v2163 = vpop.f32.mrf.mxu0
    %v2164 = vadd.f32 0.0, %v2163
    %2165 = vdwg.mxu0
    %v2166 = vunpack.c.l.bf16 %v2144
    %v2167 = vunpack.c.l.bf16 %v2145
    %v2168 = vadd.f32 %v2166, %v2162
    %v2169 = vadd.f32 %v2167, %v2164
    %v2170 = vpack.c.bf16 %v2168, %v2168
    %v2171 = vpack.c.bf16 %v2169, %v2169
    %v2172 = vxor.u32 %v2170, 2147516416
    %v2173 = vxor.u32 %v2171, 2147516416
    %v2174 = vunpack.c.l.bf16 %v2172
    %v2175 = vunpack.c.l.bf16 %v2173
    %v2176 = vmul.f32 %v2174, 1.442695
    %v2177 = vpow.pop %v2176
    %v2178 = vmul.f32 %v2175, 1.442695
    %v2179 = vpow.pop %v2178
    %v2180 = vpack.c.bf16 %v2177, %v2177
    %v2181 = vpack.c.bf16 %v2179, %v2179
    %v2182 = vunpack.c.l.bf16 %v2180
    %v2183 = vunpack.c.l.bf16 %v2181
    %v2184 = vadd.f32 %v2182, 1.0
    %v2185 = vadd.f32 %v2183, 1.0
    %v2186 = vpack.c.bf16 %v2184, %v2184
    %v2187 = vpack.c.bf16 %v2185, %v2185
    %v2188 = vunpack.c.h.bf16 %v2186
    %v2189 = vunpack.c.l.bf16 %v2186
    %v2190 = vrcp.pop %v2188
    %v2191 = vmul.f32 %v331, %v2190
    %v2192 = vrcp.pop %v2189
    %v2193 = vmul.f32 %v332, %v2192
    %v2194 = vpack.c.bf16 %v2191, %v2193
    %v2195 = vunpack.c.h.bf16 %v2187
    %v2196 = vunpack.c.l.bf16 %v2187
    %v2197 = vrcp.pop %v2195
    %v2198 = vmul.f32 %v331, %v2197
    %v2199 = vrcp.pop %v2196
    %v2200 = vmul.f32 %v332, %v2199
    %v2201 = vpack.c.bf16 %v2198, %v2200
    %v2202 = vunpack.c.l.bf16 %v2170
    %v2203 = vunpack.c.l.bf16 %v2171
    %v2204 = vtanh.pop %v2202
    %v2205 = vtanh.pop %v2203
    %v2206 = vpack.c.bf16 %v2204, %v2204
    %v2207 = vpack.c.bf16 %v2205, %v2205
    %v2208 = vunpack.c.l.bf16 %v2194
    %v2209 = vunpack.c.l.bf16 %v2201
    %v2210 = vmul.f32 %v2208, %v2129
    %v2211 = vmul.f32 %v2209, %v2130
    %v2212 = vunpack.c.l.bf16 %v2206
    %v2213 = vunpack.c.l.bf16 %v2207
    %2216 = vrot.lane.b32.xlu0 %v2212, 32
    %v2217 = vpop.permute.xlu0 %2216
    %2218 = vrot.lane.b32.xlu0 %v2213, 32
    %v2219 = vpop.permute.xlu0 %2218
    %v2222 = vmul.f32 %v2208, %v2217
    %v2223 = vmul.f32 %v2209, %v2219
    %2226 = vrot.lane.b32.xlu0 %v2222, 32
    %v2227 = vpop.permute.xlu0 %2226
    %2228 = vrot.lane.b32.xlu0 %v2223, 32
    %v2229 = vpop.permute.xlu0 %2228
    %v2232 = vadd.f32 %v2210, %v2227
    %v2233 = vadd.f32 %v2211, %v2229
    %v2234 = vtanh.pop %v2232
    %v2235 = vtanh.pop %v2233
    %2238 = vrot.lane.b32.xlu0 %v2234, 32
    %v2239 = vpop.permute.xlu0 %2238
    %2240 = vrot.lane.b32.xlu0 %v2235, 32
    %v2241 = vpop.permute.xlu0 %2240
    %v2244 = vmul.f32 %v2208, %v2239
    %v2245 = vmul.f32 %v2209, %v2241
    %v2246 = vpack.c.bf16 %v2245, %v2244
    %v2247 = vld [vmem:[#allocation6] sm:$0xf]
    %v2248 = vld [vmem:[#allocation6 + $0x4] sm:$0xf]
    %v2249 = vld [vmem:[#allocation6 + $0x8] sm:$0xf]
    %v2250 = vld [vmem:[#allocation6 + $0xc] sm:$0xf]
    %v2251 = vld [vmem:[%s6] sm:$0x1]
    %v2253 = vperm.slane %v2251, 0
    %2256 = vrot.lane.b32.xlu0 %v2246, 64
    %v2257 = vpop.permute.xlu0 %2256
    %v2262 = vunpack.c.l.b16 %v2247
    %v2263 = vunpack.c.l.b16 %v2248
    %v2264 = vunpack.c.l.b16 %v2249
    %v2265 = vunpack.c.l.b16 %v2250
    %v2266 = vpack.c.b16 %v2263, %v2262
    %v2267 = vpack.c.b16 %v2265, %v2264
    %v2271 = vsel %vm291, %v2257, 0
    %2273 = vmatpush.bf16.msra.mxu0 0
    %2274 = vmatpush.bf16.msra.mxu0 0
    %2275 = vmatpush.bf16.msra.mxu0 0
    %2276 = vmatpush.bf16.msra.mxu0 0
    %2277 = vmatpush.bf16.msra.mxu0 0
    %2278 = vmatpush.bf16.msra.mxu0 0
    %2279 = vmatpush.bf16.msra.mxu0 %v2267
    %2280 = vmatpush.bf16.msra.mxu0 %v2266
    %2281 = vmatmul.bf16.gmra.mxu0 %v2271
    %v2282 = vpop.f32.mrf.mxu0
    %v2283 = vadd.f32 %v2253, %v2282
    %v2284 = vpop.f32.mrf.mxu0
    %v2285 = vadd.f32 %v2253, %v2284
    %2286 = vdwg.mxu0
    %2287 = vst [vmem:[%s7] sm:$0xff] %v2283
    %2288 = vst [vmem:[%s7 + $0x8] sm:$0xff] %v2285
    // Predicated region
    $region38: #{lstm_fc_forward.1} parent=1 // pred_check
      _
    $region39: #{lstm_fc_forward.1} parent=1 // pred_check_branch
      %2290 = sbr.rel (0) target = $region41
    $region40: #{lstm_fc_forward.1} parent=1 // pred_region
      _
    $region41: #{lstm_fc_forward.1} parent=1 // pred_fallthru
      _
    // Predicated region
    $region42: #{lstm_fc_forward.1} parent=1 // pred_check
      _
    $region43: #{lstm_fc_forward.1} parent=1 // pred_check_branch
      %2292 = sbr.rel (0) target = $region45
    $region44: #{lstm_fc_forward.1} parent=1 // pred_region
      _
    $region45: #{lstm_fc_forward.1} parent=1 // pred_fallthru
      _
    %2293 = vsyncpa [#allocation5], 1
    %2294 = vsyncpa [#allocation7], 1

</llo_original>
